<compile_context>
chip_gen: v7x
topology: tpu7x:2x2x1
jax: 0.10.0
libtpu: 0.0.40
codegen_flags: <defaults>
</compile_context>

<pallas_src>
from functools import partial

import jax
import jax.numpy as jnp
from jax import lax
from jax.experimental import pallas as pl
from jax.experimental.pallas import tpu as pltpu


def _attention_kernel(x_ref, wqkv_ref, wp_ref, b_ref, o_ref, *scratch,
                      heads_per_group, head_dim):
    """One grid step == (one batch element, one query tile, one head GROUP).

    x_ref    : (N, C)        full sequence for this batch element (compute dtype)
    wqkv_ref : (C, 3*G*D)    fused [Q|K|V] projection for this head group
                             (softmax scale pre-folded into the Q columns)
    wp_ref   : (G*D, C)      this group's slice of the output projection
    b_ref    : (1, C)        output projection bias (f32)
    o_ref    : (TQ, C)       output tile
    scratch  : (ctx_ref,) or (ctx_ref, acc_ref)
               ctx_ref (TQ, G*D) compute-dtype group-context staging buffer;
               acc_ref (TQ, C) f32 accumulator — only present when the output
               dtype is not f32 (otherwise o_ref itself is the accumulator).
    """
    gi = pl.program_id(2)
    n_groups = pl.num_programs(2)
    G, D = heads_per_group, head_dim
    GD = G * D
    N = x_ref.shape[0]
    tq = o_ref.shape[0]
    cdt = x_ref.dtype                       # MXU operand dtype (f32 or bf16)
    approx = cdt != jnp.float32             # EUP approx reciprocal on bf16 path

    ctx_ref = scratch[0]
    acc_ref = scratch[1] if len(scratch) > 1 else o_ref

    @pl.when(gi == 0)
    def _init():
        # Fold the output-projection bias into the accumulator init.
        acc_ref[...] = jnp.broadcast_to(b_ref[...], acc_ref.shape)

    x = x_ref[...]                                            # (N, C)
    if tq == N:
        # Single query tile: one fused wide MXU matmul for the whole group's
        # Q/K/V (full lane fill, one weight stream).
        qkv = jnp.dot(x, wqkv_ref[...], preferred_element_type=jnp.float32)
        q = qkv[:, 0 * GD:1 * GD]                             # (TQ, G*D)
        k = qkv[:, 1 * GD:2 * GD]                             # (N,  G*D)
        v = qkv[:, 2 * GD:3 * GD]                             # (N,  G*D)
    else:
        # Multi-tile fallback: Q only for this query tile, K/V for the full
        # sequence (still recomputed per tile).
        # TODO(synk): flash/online-softmax K/V tiling so K/V are projected once.
        q_start = pl.multiple_of(pl.program_id(1) * tq, tq)
        xq = x_ref[pl.ds(q_start, tq), :]                     # (TQ, C)
        q = jnp.dot(xq, wqkv_ref[:, 0 * GD:1 * GD],
                    preferred_element_type=jnp.float32)       # (TQ, G*D)
        kv = jnp.dot(x, wqkv_ref[:, 1 * GD:3 * GD],
                     preferred_element_type=jnp.float32)      # (N, 2*G*D)
        k = kv[:, :GD]
        v = kv[:, GD:]

    q = q.astype(cdt)
    k = k.astype(cdt)
    v = v.astype(cdt)

    # Per-head attention, unrolled over the G heads of this group.
    for g in range(G):
        qh = q[:, g * D:(g + 1) * D]                          # (TQ, D)
        kh = k[:, g * D:(g + 1) * D]                          # (N, D)
        vh = v[:, g * D:(g + 1) * D]                          # (N, D)

        # Scores (TQ, N): contract over D; no explicit kh.T (MXU consumes the
        # transposed operand directly, XLU stays free for the row reductions).
        s = lax.dot_general(qh, kh, (((1,), (1,)), ((), ())),
                            preferred_element_type=jnp.float32)

        # Numerically-stable softmax in f32; reuse the score buffer.
        s = s - jnp.max(s, axis=-1, keepdims=True)
        s = jnp.exp(s)
        denom = jnp.sum(s, axis=-1, keepdims=True)            # (TQ, 1) f32

        ctx = jnp.dot(s.astype(cdt), vh,
                      preferred_element_type=jnp.float32)     # (TQ, D)
        # Defer the softmax normalization to the small context tile instead of
        # the big (TQ, N) probability tile.
        ctx = ctx * pl.reciprocal(denom, approx=approx)
        ctx_ref[:, g * D:(g + 1) * D] = ctx.astype(ctx_ref.dtype)

    # One wide output projection per group, accumulated in f32.
    acc_ref[...] += jnp.dot(ctx_ref[...], wp_ref[...],
                            preferred_element_type=jnp.float32)

    if len(scratch) > 1:
        @pl.when(gi == n_groups - 1)
        def _finalize():
            o_ref[...] = acc_ref[...].astype(o_ref.dtype)


def _pick_head_group(num_heads, head_dim, mxu_lane_width):
    """Largest divisor G of num_heads with G*head_dim <= mxu_lane_width."""
    target = max(mxu_lane_width, head_dim)
    best = 1
    for g in range(1, num_heads + 1):
        if num_heads % g == 0 and g * head_dim <= target:
            best = g
    return best


def attention_forward(x, wqkv, wproj, bproj, *, num_heads, head_dim=None,
                      qk_scale=None, compute_dtype=None, q_block=None,
                      head_group=None, mxu_lane_width=256,
                      vmem_budget_bytes=40 * 1024 * 1024):
    """Multi-head self attention matching the PyTorch module forward.

    x     : (B, N, C)
    wqkv  : (3*H*D, C)  qkv.weight (torch layout: rows = [q | k | v] x heads)
    wproj : (C, H*D)    proj.weight
    bproj : (C,)        proj.bias

    compute_dtype : MXU operand dtype. None -> x.dtype (exact semantics; used
        for validation). Production path: jnp.bfloat16 (2-4x MXU throughput,
        half the x/weight traffic; accumulation & softmax stay f32).
    head_group    : heads processed per grid step. Default: largest divisor of
        num_heads with head_group*head_dim <= mxu_lane_width (256 for v6e/v7x;
        pass mxu_lane_width=128 on v5e so G*D exactly fills the 128-wide MXU).
    vmem_budget_bytes : budget used to decide whether the whole sequence fits
        as one query tile (K/V projected exactly once). 40 MiB is v7x-safe
        (64 MiB physical VMEM); v5e/v6e (128 MiB) can raise it.
    """
    B, N, C = x.shape
    if head_dim is None:
        head_dim = C // num_heads
    H, D = num_heads, head_dim
    scale = qk_scale if qk_scale is not None else D ** (-0.5)
    if compute_dtype is None:
        compute_dtype = x.dtype

    # --- head grouping: G heads per grid step so G*D fills the MXU lanes ----
    if head_group is None:
        head_group = _pick_head_group(H, D, mxu_lane_width)
    G = head_group
    assert H % G == 0, "head_group must divide num_heads"
    HG = H // G
    GD = G * D

    cdt_size = jnp.dtype(compute_dtype).itemsize
    out_dtype = x.dtype
    out_size = jnp.dtype(out_dtype).itemsize
    # f32 outputs accumulate directly into the (VMEM-resident) output block.
    acc_in_output = jnp.dtype(out_dtype) == jnp.dtype(jnp.float32)

    def vmem_bytes(tq):
        b = 2 * N * C * cdt_size             # x (double-buffered)
        b += 2 * C * 3 * GD * cdt_size       # fused qkv weight slab (dbuf)
        b += 2 * GD * C * cdt_size           # output-projection slab (dbuf)
        b += 2 * C * 4                       # bias
        b += 2 * tq * C * out_size           # output tile (dbuf)
        b += tq * GD * cdt_size              # ctx scratch
        if not acc_in_output:
            b += tq * C * 4                  # f32 accumulator scratch
        # compiler-managed intermediates: fused qkv result, live f32 score
        # tile(s), per-head f32 context.
        b += N * 3 * GD * 4 + 2 * tq * N * 4 + tq * GD * 4
        return b

    # --- query tiling: prefer one tile so K/V are projected exactly once ----
    if q_block is None:
        q_block = N
        if N % 128 == 0 and vmem_bytes(N) > vmem_budget_bytes:
            # TODO(synk): flash/online-softmax K/V tiling; this fallback
            # recomputes K/V per query tile.
            q_block = 128
        elif B == 1 and N >= 2 * C and N % 16 == 0:
            # B==1: split the query axis so both v7x TensorCores get work
            # (only when score/context work dominates the K/V recompute).
            q_block = N // 2
    assert N % q_block == 0, "q_block must divide the sequence length"
    nq = N // q_block

    # --- one-time weight layout prep (softmax scale folded into q slab) -----
    w3 = wqkv.reshape(3, H, D, C)                             # [q/k/v, H, D, C]
    wq = w3[0] * scale
    wqkv_g = jnp.concatenate(
        [wq.reshape(HG, GD, C), w3[1].reshape(HG, GD, C), w3[2].reshape(HG, GD, C)],
        axis=1).transpose(0, 2, 1)                            # (HG, C, 3*G*D)
    wp_g = wproj.reshape(C, HG, GD).transpose(1, 2, 0)        # (HG, G*D, C)

    xc = x.astype(compute_dtype)
    wqkv_g = wqkv_g.astype(compute_dtype)
    wp_g = wp_g.astype(compute_dtype)
    b2 = bproj.reshape(1, C).astype(jnp.float32)

    scratch_shapes = [pltpu.VMEM((q_block, GD), compute_dtype)]
    if not acc_in_output:
        scratch_shapes.append(pltpu.VMEM((q_block, C), jnp.float32))

    vmem_limit = int(min(max(vmem_bytes(q_block) * 3 // 2 + (2 << 20), 16 << 20),
                         100 << 20))

    kernel = partial(_attention_kernel, heads_per_group=G, head_dim=D)

    return pl.pallas_call(
        kernel,
        out_shape=jax.ShapeDtypeStruct((B, N, C), out_dtype),
        grid_spec=pltpu.PrefetchScalarGridSpec(
            num_scalar_prefetch=0,
            grid=(B, nq, HG),
            in_specs=[
                # x: full sequence, resident per batch element.
                # TODO(synk): pipeline_mode=pl.Buffered(1) on v7x — the block
                # index never changes with (i, g), so double-buffering x only
                # burns VMEM.
                pl.BlockSpec((pl.Squeezed(), N, C), lambda b, i, g: (b, 0, 0)),
                # Fused per-group QKV weight slab (one DMA stream per group).
                pl.BlockSpec((pl.Squeezed(), C, 3 * GD), lambda b, i, g: (g, 0, 0)),
                # Per-group output-projection slab.
                pl.BlockSpec((pl.Squeezed(), GD, C), lambda b, i, g: (g, 0, 0)),
                pl.BlockSpec((1, C), lambda b, i, g: (0, 0)),
            ],
            out_specs=pl.BlockSpec((pl.Squeezed(), q_block, C),
                                   lambda b, i, g: (b, i, 0)),
            scratch_shapes=scratch_shapes,
        ),
        compiler_params=pltpu.CompilerParams(
            dimension_semantics=("parallel", "parallel", "arbitrary"),
            vmem_limit_bytes=vmem_limit,
        ),
    )(xc, wqkv_g, wp_g, b2)


def attention_reference(x, wqkv, wproj, bproj, *, num_heads, head_dim=None,
                        qk_scale=None):
    """Pure-JAX reference mirroring the PyTorch forward exactly."""
    B, N, C = x.shape
    if head_dim is None:
        head_dim = C // num_heads
    scale = qk_scale if qk_scale is not None else head_dim ** (-0.5)
    qkv = jnp.einsum("bnc,oc->bno", x, wqkv)                  # F.linear, no bias
    qkv = qkv.reshape(B, N, 3, num_heads, head_dim).transpose(2, 0, 3, 1, 4)
    q, k, v = qkv[0], qkv[1], qkv[2]
    q = q * scale
    attn = jnp.einsum("bhnd,bhmd->bhnm", q, k)
    attn = jax.nn.softmax(attn, axis=-1)
    out = jnp.einsum("bhnm,bhmd->bhnd", attn, v)
    out = out.transpose(0, 2, 1, 3).reshape(B, N, num_heads * head_dim)
    out = jnp.einsum("bnd,cd->bnc", out, wproj) + bproj
    return out


if __name__ == "__main__":
    # Small shapes consistent with the module: B=2, N=8 (seq), C=32 (dim), 8 heads.
    B, N, C = 2, 8, 32
    num_heads = 8
    head_dim = C // num_heads
    all_head_dim = num_heads * head_dim

    key = jax.random.PRNGKey(0)
    kx, kw1, kw2, kb = jax.random.split(key, 4)

    x = jax.random.normal(kx, (B, N, C), dtype=jnp.float32)
    # Deterministic synthetic parameters (no checkpoint loading).
    wqkv = jax.random.normal(kw1, (3 * all_head_dim, C), dtype=jnp.float32) * 0.05
    wproj = jax.random.normal(kw2, (C, all_head_dim), dtype=jnp.float32) * 0.05
    bproj = jax.random.normal(kb, (C,), dtype=jnp.float32) * 0.01

    ref = attention_reference(x, wqkv, wproj, bproj, num_heads=num_heads)

    # Exact-dtype path (matches the f32 PyTorch module semantics). All 8 heads
    # form a single group here (G*D = 32 <= 256).
    out = attention_forward(x, wqkv, wproj, bproj, num_heads=num_heads)
    out = jax.block_until_ready(out)
    assert out.shape == (B, N, C)
    assert jnp.allclose(out, ref, atol=1e-4, rtol=1e-4), "f32 mismatch vs reference"

    # Multi-group configuration (4 groups of 2 heads) — exercises the
    # accumulate-over-head-groups path (init / accumulate / resident output).
    out_g2 = attention_forward(x, wqkv, wproj, bproj, num_heads=num_heads,
                               head_group=2)
    out_g2 = jax.block_until_ready(out_g2)
    assert jnp.allclose(out_g2, ref, atol=1e-4, rtol=1e-4), "multi-group mismatch"

    # bf16-MXU-operand production configuration (f32 accumulation / softmax).
    out_bf16 = attention_forward(x, wqkv, wproj, bproj, num_heads=num_heads,
                                 compute_dtype=jnp.bfloat16)
    out_bf16 = jax.block_until_ready(out_bf16)
    assert out_bf16.shape == (B, N, C)
    assert jnp.allclose(out_bf16, ref, atol=5e-2, rtol=5e-2), "bf16 mismatch vs reference"

    print("KERNEL_OK")
</pallas_src>

<mosaic_0001>
module attributes {stable_mosaic.version = 11 : i64} {
  func.func @_attention_kernel(%arg0: i32, %arg1: i32, %arg2: i32, %arg3: memref<1x8x32xf32, #tpu.memory_space<vmem>>, %arg4: memref<1x32x96xf32, #tpu.memory_space<vmem>>, %arg5: memref<1x32x32xf32, #tpu.memory_space<vmem>>, %arg6: memref<1x32xf32, #tpu.memory_space<vmem>>, %arg7: memref<1x8x32xf32, #tpu.memory_space<vmem>>, %arg8: memref<8x32xf32, #tpu.memory_space<vmem>>) attributes {dimension_semantics = [#tpu.dimension_semantics<parallel>, #tpu.dimension_semantics<parallel>, #tpu.dimension_semantics<arbitrary>], iteration_bounds = array<i64: 2, 1, 1>, scalar_prefetch = 0 : i64, scratch_operands = 1 : i64, tpu.core_type = #tpu.core_type<tc>, window_params = [{transform_indices = @transform_0, window_bounds = array<i64: 1, 8, 32>}, {transform_indices = @transform_1, window_bounds = array<i64: 1, 32, 96>}, {transform_indices = @transform_2, window_bounds = array<i64: 1, 32, 32>}, {pipeline_mode = #tpu.pipeline_mode<synchronous>, transform_indices = @transform_3, window_bounds = array<i64: 1, 32>}, {transform_indices = @transform_4, window_bounds = array<i64: 1, 8, 32>}]} {
    %c0_i32 = arith.constant 0 : i32
    %0 = arith.cmpi eq, %arg2, %c0_i32 : i32
    %1 = arith.extui %0 : i1 to i32
    %c0_i32_0 = arith.constant 0 : i32
    %2 = arith.cmpi ne, %1, %c0_i32_0 : i32
    scf.if %2 {
      %c0_59 = arith.constant 0 : index
      %c0_60 = arith.constant 0 : index
      %149 = vector.load %arg6[%c0_59, %c0_60] : memref<1x32xf32, #tpu.memory_space<vmem>>, vector<1x32xf32>
      %150 = vector.shape_cast %149 : vector<1x32xf32> to vector<1x32xf32>
      %151 = vector.broadcast %150 : vector<1x32xf32> to vector<8x32xf32>
      %c0_61 = arith.constant 0 : index
      %c0_62 = arith.constant 0 : index
      %c0_63 = arith.constant 0 : index
      %152 = vector.load %arg7[%c0_61, %c0_62, %c0_63] : memref<1x8x32xf32, #tpu.memory_space<vmem>>, vector<1x8x32xf32>
      %153 = vector.shape_cast %152 : vector<1x8x32xf32> to vector<8x32xf32>
      %154 = vector.shape_cast %151 : vector<8x32xf32> to vector<1x8x32xf32>
      tpu.vector_store %arg7[%c0_61, %c0_62, %c0_63], %154 {strides = array<i32>} : memref<1x8x32xf32, #tpu.memory_space<vmem>>, vector<1x8x32xf32>,
    } else {
    }
    %c0 = arith.constant 0 : index
    %c0_1 = arith.constant 0 : index
    %c0_2 = arith.constant 0 : index
    %3 = vector.load %arg3[%c0, %c0_1, %c0_2] : memref<1x8x32xf32, #tpu.memory_space<vmem>>, vector<1x8x32xf32>
    %4 = vector.shape_cast %3 : vector<1x8x32xf32> to vector<8x32xf32>
    %c0_3 = arith.constant 0 : index
    %c0_4 = arith.constant 0 : index
    %c0_5 = arith.constant 0 : index
    %5 = vector.load %arg4[%c0_3, %c0_4, %c0_5] : memref<1x32x96xf32, #tpu.memory_space<vmem>>, vector<1x32x96xf32>
    %6 = vector.shape_cast %5 : vector<1x32x96xf32> to vector<32x96xf32>
    %cst = arith.constant dense<0.000000e+00> : vector<8x96xf32>
    %7 = tpu.matmul %4, %6, %cst {dimension_numbers = #tpu.dot_dimension_numbers<[1], [0], [0], [1], [0, 0, 1, 1], [], []>} : vector<8x32xf32>, vector<32x96xf32>, vector<8x96xf32> -> vector<8x96xf32>
    %8 = vector.extract_strided_slice %7 {offsets = [0, 0], sizes = [8, 32], strides = [1, 1]} : vector<8x96xf32> to vector<8x32xf32>
    %9 = vector.extract_strided_slice %7 {offsets = [0, 32], sizes = [8, 32], strides = [1, 1]} : vector<8x96xf32> to vector<8x32xf32>
    %10 = vector.extract_strided_slice %7 {offsets = [0, 64], sizes = [8, 32], strides = [1, 1]} : vector<8x96xf32> to vector<8x32xf32>
    %11 = vector.extract_strided_slice %8 {offsets = [0, 0], sizes = [8, 4], strides = [1, 1]} : vector<8x32xf32> to vector<8x4xf32>
    %12 = vector.extract_strided_slice %9 {offsets = [0, 0], sizes = [8, 4], strides = [1, 1]} : vector<8x32xf32> to vector<8x4xf32>
    %13 = vector.extract_strided_slice %10 {offsets = [0, 0], sizes = [8, 4], strides = [1, 1]} : vector<8x32xf32> to vector<8x4xf32>
    %cst_6 = arith.constant dense<0.000000e+00> : vector<8x8xf32>
    %14 = tpu.matmul %11, %12, %cst_6 {dimension_numbers = #tpu.dot_dimension_numbers<[1], [1], [0], [0], [0, 0, 1, 0], [], []>} : vector<8x4xf32>, vector<8x4xf32>, vector<8x8xf32> -> vector<8x8xf32>
    %cst_7 = arith.constant dense<0xFF800000> : vector<8xf32>
    %15 = vector.multi_reduction <maximumf>, %14, %cst_7 [1] : vector<8x8xf32> to vector<8xf32>
    %16 = vector.shape_cast %15 : vector<8xf32> to vector<8x1xf32>
    %17 = vector.broadcast %16 : vector<8x1xf32> to vector<8x8xf32>
    %18 = arith.subf %14, %17 : vector<8x8xf32>
    %19 = math.exp %18 : vector<8x8xf32>
    %cst_8 = arith.constant dense<0.000000e+00> : vector<8xf32>
    %20 = vector.multi_reduction <add>, %19, %cst_8 [1] : vector<8x8xf32> to vector<8xf32>
    %21 = vector.shape_cast %20 : vector<8xf32> to vector<8x1xf32>
    %cst_9 = arith.constant dense<0.000000e+00> : vector<8x4xf32>
    %22 = tpu.matmul %19, %13, %cst_9 {dimension_numbers = #tpu.dot_dimension_numbers<[1], [0], [0], [1], [0, 0, 1, 1], [], []>} : vector<8x8xf32>, vector<8x4xf32>, vector<8x4xf32> -> vector<8x4xf32>
    %23 = tpu.reciprocal %21 : vector<8x1xf32> -> vector<8x1xf32>
    %24 = vector.broadcast %23 : vector<8x1xf32> to vector<8x4xf32>
    %25 = arith.mulf %22, %24 : vector<8x4xf32>
    %c0_10 = arith.constant 0 : index
    %c0_11 = arith.constant 0 : index
    %26 = vector.load %arg8[%c0_10, %c0_11] : memref<8x32xf32, #tpu.memory_space<vmem>>, vector<8x4xf32>
    tpu.vector_store %arg8[%c0_10, %c0_11], %25 {strides = array<i32>} : memref<8x32xf32, #tpu.memory_space<vmem>>, vector<8x4xf32>,
    %27 = vector.extract_strided_slice %8 {offsets = [0, 4], sizes = [8, 4], strides = [1, 1]} : vector<8x32xf32> to vector<8x4xf32>
    %28 = vector.extract_strided_slice %9 {offsets = [0, 4], sizes = [8, 4], strides = [1, 1]} : vector<8x32xf32> to vector<8x4xf32>
    %29 = vector.extract_strided_slice %10 {offsets = [0, 4], sizes = [8, 4], strides = [1, 1]} : vector<8x32xf32> to vector<8x4xf32>
    %cst_12 = arith.constant dense<0.000000e+00> : vector<8x8xf32>
    %30 = tpu.matmul %27, %28, %cst_12 {dimension_numbers = #tpu.dot_dimension_numbers<[1], [1], [0], [0], [0, 0, 1, 0], [], []>} : vector<8x4xf32>, vector<8x4xf32>, vector<8x8xf32> -> vector<8x8xf32>
    %cst_13 = arith.constant dense<0xFF800000> : vector<8xf32>
    %31 = vector.multi_reduction <maximumf>, %30, %cst_13 [1] : vector<8x8xf32> to vector<8xf32>
    %32 = vector.shape_cast %31 : vector<8xf32> to vector<8x1xf32>
    %33 = vector.broadcast %32 : vector<8x1xf32> to vector<8x8xf32>
    %34 = arith.subf %30, %33 : vector<8x8xf32>
    %35 = math.exp %34 : vector<8x8xf32>
    %cst_14 = arith.constant dense<0.000000e+00> : vector<8xf32>
    %36 = vector.multi_reduction <add>, %35, %cst_14 [1] : vector<8x8xf32> to vector<8xf32>
    %37 = vector.shape_cast %36 : vector<8xf32> to vector<8x1xf32>
    %cst_15 = arith.constant dense<0.000000e+00> : vector<8x4xf32>
    %38 = tpu.matmul %35, %29, %cst_15 {dimension_numbers = #tpu.dot_dimension_numbers<[1], [0], [0], [1], [0, 0, 1, 1], [], []>} : vector<8x8xf32>, vector<8x4xf32>, vector<8x4xf32> -> vector<8x4xf32>
    %39 = tpu.reciprocal %37 : vector<8x1xf32> -> vector<8x1xf32>
    %40 = vector.broadcast %39 : vector<8x1xf32> to vector<8x4xf32>
    %41 = arith.mulf %38, %40 : vector<8x4xf32>
    %c0_16 = arith.constant 0 : index
    %c4 = arith.constant 4 : index
    %42 = vector.load %arg8[%c0_16, %c4] : memref<8x32xf32, #tpu.memory_space<vmem>>, vector<8x4xf32>
    tpu.vector_store %arg8[%c0_16, %c4], %41 {strides = array<i32>} : memref<8x32xf32, #tpu.memory_space<vmem>>, vector<8x4xf32>,
    %43 = vector.extract_strided_slice %8 {offsets = [0, 8], sizes = [8, 4], strides = [1, 1]} : vector<8x32xf32> to vector<8x4xf32>
    %44 = vector.extract_strided_slice %9 {offsets = [0, 8], sizes = [8, 4], strides = [1, 1]} : vector<8x32xf32> to vector<8x4xf32>
    %45 = vector.extract_strided_slice %10 {offsets = [0, 8], sizes = [8, 4], strides = [1, 1]} : vector<8x32xf32> to vector<8x4xf32>
    %cst_17 = arith.constant dense<0.000000e+00> : vector<8x8xf32>
    %46 = tpu.matmul %43, %44, %cst_17 {dimension_numbers = #tpu.dot_dimension_numbers<[1], [1], [0], [0], [0, 0, 1, 0], [], []>} : vector<8x4xf32>, vector<8x4xf32>, vector<8x8xf32> -> vector<8x8xf32>
    %cst_18 = arith.constant dense<0xFF800000> : vector<8xf32>
    %47 = vector.multi_reduction <maximumf>, %46, %cst_18 [1] : vector<8x8xf32> to vector<8xf32>
    %48 = vector.shape_cast %47 : vector<8xf32> to vector<8x1xf32>
    %49 = vector.broadcast %48 : vector<8x1xf32> to vector<8x8xf32>
    %50 = arith.subf %46, %49 : vector<8x8xf32>
    %51 = math.exp %50 : vector<8x8xf32>
    %cst_19 = arith.constant dense<0.000000e+00> : vector<8xf32>
    %52 = vector.multi_reduction <add>, %51, %cst_19 [1] : vector<8x8xf32> to vector<8xf32>
    %53 = vector.shape_cast %52 : vector<8xf32> to vector<8x1xf32>
    %cst_20 = arith.constant dense<0.000000e+00> : vector<8x4xf32>
    %54 = tpu.matmul %51, %45, %cst_20 {dimension_numbers = #tpu.dot_dimension_numbers<[1], [0], [0], [1], [0, 0, 1, 1], [], []>} : vector<8x8xf32>, vector<8x4xf32>, vector<8x4xf32> -> vector<8x4xf32>
    %55 = tpu.reciprocal %53 : vector<8x1xf32> -> vector<8x1xf32>
    %56 = vector.broadcast %55 : vector<8x1xf32> to vector<8x4xf32>
    %57 = arith.mulf %54, %56 : vector<8x4xf32>
    %c0_21 = arith.constant 0 : index
    %c8 = arith.constant 8 : index
    %58 = vector.load %arg8[%c0_21, %c8] : memref<8x32xf32, #tpu.memory_space<vmem>>, vector<8x4xf32>
    tpu.vector_store %arg8[%c0_21, %c8], %57 {strides = array<i32>} : memref<8x32xf32, #tpu.memory_space<vmem>>, vector<8x4xf32>,
    %59 = vector.extract_strided_slice %8 {offsets = [0, 12], sizes = [8, 4], strides = [1, 1]} : vector<8x32xf32> to vector<8x4xf32>
    %60 = vector.extract_strided_slice %9 {offsets = [0, 12], sizes = [8, 4], strides = [1, 1]} : vector<8x32xf32> to vector<8x4xf32>
    %61 = vector.extract_strided_slice %10 {offsets = [0, 12], sizes = [8, 4], strides = [1, 1]} : vector<8x32xf32> to vector<8x4xf32>
    %cst_22 = arith.constant dense<0.000000e+00> : vector<8x8xf32>
    %62 = tpu.matmul %59, %60, %cst_22 {dimension_numbers = #tpu.dot_dimension_numbers<[1], [1], [0], [0], [0, 0, 1, 0], [], []>} : vector<8x4xf32>, vector<8x4xf32>, vector<8x8xf32> -> vector<8x8xf32>
    %cst_23 = arith.constant dense<0xFF800000> : vector<8xf32>
    %63 = vector.multi_reduction <maximumf>, %62, %cst_23 [1] : vector<8x8xf32> to vector<8xf32>
    %64 = vector.shape_cast %63 : vector<8xf32> to vector<8x1xf32>
    %65 = vector.broadcast %64 : vector<8x1xf32> to vector<8x8xf32>
    %66 = arith.subf %62, %65 : vector<8x8xf32>
    %67 = math.exp %66 : vector<8x8xf32>
    %cst_24 = arith.constant dense<0.000000e+00> : vector<8xf32>
    %68 = vector.multi_reduction <add>, %67, %cst_24 [1] : vector<8x8xf32> to vector<8xf32>
    %69 = vector.shape_cast %68 : vector<8xf32> to vector<8x1xf32>
    %cst_25 = arith.constant dense<0.000000e+00> : vector<8x4xf32>
    %70 = tpu.matmul %67, %61, %cst_25 {dimension_numbers = #tpu.dot_dimension_numbers<[1], [0], [0], [1], [0, 0, 1, 1], [], []>} : vector<8x8xf32>, vector<8x4xf32>, vector<8x4xf32> -> vector<8x4xf32>
    %71 = tpu.reciprocal %69 : vector<8x1xf32> -> vector<8x1xf32>
    %72 = vector.broadcast %71 : vector<8x1xf32> to vector<8x4xf32>
    %73 = arith.mulf %70, %72 : vector<8x4xf32>
    %c0_26 = arith.constant 0 : index
    %c12 = arith.constant 12 : index
    %74 = vector.load %arg8[%c0_26, %c12] : memref<8x32xf32, #tpu.memory_space<vmem>>, vector<8x4xf32>
    tpu.vector_store %arg8[%c0_26, %c12], %73 {strides = array<i32>} : memref<8x32xf32, #tpu.memory_space<vmem>>, vector<8x4xf32>,
    %75 = vector.extract_strided_slice %8 {offsets = [0, 16], sizes = [8, 4], strides = [1, 1]} : vector<8x32xf32> to vector<8x4xf32>
    %76 = vector.extract_strided_slice %9 {offsets = [0, 16], sizes = [8, 4], strides = [1, 1]} : vector<8x32xf32> to vector<8x4xf32>
    %77 = vector.extract_strided_slice %10 {offsets = [0, 16], sizes = [8, 4], strides = [1, 1]} : vector<8x32xf32> to vector<8x4xf32>
    %cst_27 = arith.constant dense<0.000000e+00> : vector<8x8xf32>
    %78 = tpu.matmul %75, %76, %cst_27 {dimension_numbers = #tpu.dot_dimension_numbers<[1], [1], [0], [0], [0, 0, 1, 0], [], []>} : vector<8x4xf32>, vector<8x4xf32>, vector<8x8xf32> -> vector<8x8xf32>
    %cst_28 = arith.constant dense<0xFF800000> : vector<8xf32>
    %79 = vector.multi_reduction <maximumf>, %78, %cst_28 [1] : vector<8x8xf32> to vector<8xf32>
    %80 = vector.shape_cast %79 : vector<8xf32> to vector<8x1xf32>
    %81 = vector.broadcast %80 : vector<8x1xf32> to vector<8x8xf32>
    %82 = arith.subf %78, %81 : vector<8x8xf32>
    %83 = math.exp %82 : vector<8x8xf32>
    %cst_29 = arith.constant dense<0.000000e+00> : vector<8xf32>
    %84 = vector.multi_reduction <add>, %83, %cst_29 [1] : vector<8x8xf32> to vector<8xf32>
    %85 = vector.shape_cast %84 : vector<8xf32> to vector<8x1xf32>
    %cst_30 = arith.constant dense<0.000000e+00> : vector<8x4xf32>
    %86 = tpu.matmul %83, %77, %cst_30 {dimension_numbers = #tpu.dot_dimension_numbers<[1], [0], [0], [1], [0, 0, 1, 1], [], []>} : vector<8x8xf32>, vector<8x4xf32>, vector<8x4xf32> -> vector<8x4xf32>
    %87 = tpu.reciprocal %85 : vector<8x1xf32> -> vector<8x1xf32>
    %88 = vector.broadcast %87 : vector<8x1xf32> to vector<8x4xf32>
    %89 = arith.mulf %86, %88 : vector<8x4xf32>
    %c0_31 = arith.constant 0 : index
    %c16 = arith.constant 16 : index
    %90 = vector.load %arg8[%c0_31, %c16] : memref<8x32xf32, #tpu.memory_space<vmem>>, vector<8x4xf32>
    tpu.vector_store %arg8[%c0_31, %c16], %89 {strides = array<i32>} : memref<8x32xf32, #tpu.memory_space<vmem>>, vector<8x4xf32>,
    %91 = vector.extract_strided_slice %8 {offsets = [0, 20], sizes = [8, 4], strides = [1, 1]} : vector<8x32xf32> to vector<8x4xf32>
    %92 = vector.extract_strided_slice %9 {offsets = [0, 20], sizes = [8, 4], strides = [1, 1]} : vector<8x32xf32> to vector<8x4xf32>
    %93 = vector.extract_strided_slice %10 {offsets = [0, 20], sizes = [8, 4], strides = [1, 1]} : vector<8x32xf32> to vector<8x4xf32>
    %cst_32 = arith.constant dense<0.000000e+00> : vector<8x8xf32>
    %94 = tpu.matmul %91, %92, %cst_32 {dimension_numbers = #tpu.dot_dimension_numbers<[1], [1], [0], [0], [0, 0, 1, 0], [], []>} : vector<8x4xf32>, vector<8x4xf32>, vector<8x8xf32> -> vector<8x8xf32>
    %cst_33 = arith.constant dense<0xFF800000> : vector<8xf32>
    %95 = vector.multi_reduction <maximumf>, %94, %cst_33 [1] : vector<8x8xf32> to vector<8xf32>
    %96 = vector.shape_cast %95 : vector<8xf32> to vector<8x1xf32>
    %97 = vector.broadcast %96 : vector<8x1xf32> to vector<8x8xf32>
    %98 = arith.subf %94, %97 : vector<8x8xf32>
    %99 = math.exp %98 : vector<8x8xf32>
    %cst_34 = arith.constant dense<0.000000e+00> : vector<8xf32>
    %100 = vector.multi_reduction <add>, %99, %cst_34 [1] : vector<8x8xf32> to vector<8xf32>
    %101 = vector.shape_cast %100 : vector<8xf32> to vector<8x1xf32>
    %cst_35 = arith.constant dense<0.000000e+00> : vector<8x4xf32>
    %102 = tpu.matmul %99, %93, %cst_35 {dimension_numbers = #tpu.dot_dimension_numbers<[1], [0], [0], [1], [0, 0, 1, 1], [], []>} : vector<8x8xf32>, vector<8x4xf32>, vector<8x4xf32> -> vector<8x4xf32>
    %103 = tpu.reciprocal %101 : vector<8x1xf32> -> vector<8x1xf32>
    %104 = vector.broadcast %103 : vector<8x1xf32> to vector<8x4xf32>
    %105 = arith.mulf %102, %104 : vector<8x4xf32>
    %c0_36 = arith.constant 0 : index
    %c20 = arith.constant 20 : index
    %106 = vector.load %arg8[%c0_36, %c20] : memref<8x32xf32, #tpu.memory_space<vmem>>, vector<8x4xf32>
    tpu.vector_store %arg8[%c0_36, %c20], %105 {strides = array<i32>} : memref<8x32xf32, #tpu.memory_space<vmem>>, vector<8x4xf32>,
    %107 = vector.extract_strided_slice %8 {offsets = [0, 24], sizes = [8, 4], strides = [1, 1]} : vector<8x32xf32> to vector<8x4xf32>
    %108 = vector.extract_strided_slice %9 {offsets = [0, 24], sizes = [8, 4], strides = [1, 1]} : vector<8x32xf32> to vector<8x4xf32>
    %109 = vector.extract_strided_slice %10 {offsets = [0, 24], sizes = [8, 4], strides = [1, 1]} : vector<8x32xf32> to vector<8x4xf32>
    %cst_37 = arith.constant dense<0.000000e+00> : vector<8x8xf32>
    %110 = tpu.matmul %107, %108, %cst_37 {dimension_numbers = #tpu.dot_dimension_numbers<[1], [1], [0], [0], [0, 0, 1, 0], [], []>} : vector<8x4xf32>, vector<8x4xf32>, vector<8x8xf32> -> vector<8x8xf32>
    %cst_38 = arith.constant dense<0xFF800000> : vector<8xf32>
    %111 = vector.multi_reduction <maximumf>, %110, %cst_38 [1] : vector<8x8xf32> to vector<8xf32>
    %112 = vector.shape_cast %111 : vector<8xf32> to vector<8x1xf32>
    %113 = vector.broadcast %112 : vector<8x1xf32> to vector<8x8xf32>
    %114 = arith.subf %110, %113 : vector<8x8xf32>
    %115 = math.exp %114 : vector<8x8xf32>
    %cst_39 = arith.constant dense<0.000000e+00> : vector<8xf32>
    %116 = vector.multi_reduction <add>, %115, %cst_39 [1] : vector<8x8xf32> to vector<8xf32>
    %117 = vector.shape_cast %116 : vector<8xf32> to vector<8x1xf32>
    %cst_40 = arith.constant dense<0.000000e+00> : vector<8x4xf32>
    %118 = tpu.matmul %115, %109, %cst_40 {dimension_numbers = #tpu.dot_dimension_numbers<[1], [0], [0], [1], [0, 0, 1, 1], [], []>} : vector<8x8xf32>, vector<8x4xf32>, vector<8x4xf32> -> vector<8x4xf32>
    %119 = tpu.reciprocal %117 : vector<8x1xf32> -> vector<8x1xf32>
    %120 = vector.broadcast %119 : vector<8x1xf32> to vector<8x4xf32>
    %121 = arith.mulf %118, %120 : vector<8x4xf32>
    %c0_41 = arith.constant 0 : index
    %c24 = arith.constant 24 : index
    %122 = vector.load %arg8[%c0_41, %c24] : memref<8x32xf32, #tpu.memory_space<vmem>>, vector<8x4xf32>
    tpu.vector_store %arg8[%c0_41, %c24], %121 {strides = array<i32>} : memref<8x32xf32, #tpu.memory_space<vmem>>, vector<8x4xf32>,
    %123 = vector.extract_strided_slice %8 {offsets = [0, 28], sizes = [8, 4], strides = [1, 1]} : vector<8x32xf32> to vector<8x4xf32>
    %124 = vector.extract_strided_slice %9 {offsets = [0, 28], sizes = [8, 4], strides = [1, 1]} : vector<8x32xf32> to vector<8x4xf32>
    %125 = vector.extract_strided_slice %10 {offsets = [0, 28], sizes = [8, 4], strides = [1, 1]} : vector<8x32xf32> to vector<8x4xf32>
    %cst_42 = arith.constant dense<0.000000e+00> : vector<8x8xf32>
    %126 = tpu.matmul %123, %124, %cst_42 {dimension_numbers = #tpu.dot_dimension_numbers<[1], [1], [0], [0], [0, 0, 1, 0], [], []>} : vector<8x4xf32>, vector<8x4xf32>, vector<8x8xf32> -> vector<8x8xf32>
    %cst_43 = arith.constant dense<0xFF800000> : vector<8xf32>
    %127 = vector.multi_reduction <maximumf>, %126, %cst_43 [1] : vector<8x8xf32> to vector<8xf32>
    %128 = vector.shape_cast %127 : vector<8xf32> to vector<8x1xf32>
    %129 = vector.broadcast %128 : vector<8x1xf32> to vector<8x8xf32>
    %130 = arith.subf %126, %129 : vector<8x8xf32>
    %131 = math.exp %130 : vector<8x8xf32>
    %cst_44 = arith.constant dense<0.000000e+00> : vector<8xf32>
    %132 = vector.multi_reduction <add>, %131, %cst_44 [1] : vector<8x8xf32> to vector<8xf32>
    %133 = vector.shape_cast %132 : vector<8xf32> to vector<8x1xf32>
    %cst_45 = arith.constant dense<0.000000e+00> : vector<8x4xf32>
    %134 = tpu.matmul %131, %125, %cst_45 {dimension_numbers = #tpu.dot_dimension_numbers<[1], [0], [0], [1], [0, 0, 1, 1], [], []>} : vector<8x8xf32>, vector<8x4xf32>, vector<8x4xf32> -> vector<8x4xf32>
    %135 = tpu.reciprocal %133 : vector<8x1xf32> -> vector<8x1xf32>
    %136 = vector.broadcast %135 : vector<8x1xf32> to vector<8x4xf32>
    %137 = arith.mulf %134, %136 : vector<8x4xf32>
    %c0_46 = arith.constant 0 : index
    %c28 = arith.constant 28 : index
    %138 = vector.load %arg8[%c0_46, %c28] : memref<8x32xf32, #tpu.memory_space<vmem>>, vector<8x4xf32>
    tpu.vector_store %arg8[%c0_46, %c28], %137 {strides = array<i32>} : memref<8x32xf32, #tpu.memory_space<vmem>>, vector<8x4xf32>,
    %c0_47 = arith.constant 0 : index
    %c0_48 = arith.constant 0 : index
    %c0_49 = arith.constant 0 : index
    %139 = vector.load %arg7[%c0_47, %c0_48, %c0_49] : memref<1x8x32xf32, #tpu.memory_space<vmem>>, vector<1x8x32xf32>
    %140 = vector.shape_cast %139 : vector<1x8x32xf32> to vector<8x32xf32>
    %c0_50 = arith.constant 0 : index
    %c0_51 = arith.constant 0 : index
    %141 = vector.load %arg8[%c0_50, %c0_51] : memref<8x32xf32, #tpu.memory_space<vmem>>, vector<8x32xf32>
    %c0_52 = arith.constant 0 : index
    %c0_53 = arith.constant 0 : index
    %c0_54 = arith.constant 0 : index
    %142 = vector.load %arg5[%c0_52, %c0_53, %c0_54] : memref<1x32x32xf32, #tpu.memory_space<vmem>>, vector<1x32x32xf32>
    %143 = vector.shape_cast %142 : vector<1x32x32xf32> to vector<32x32xf32>
    %cst_55 = arith.constant dense<0.000000e+00> : vector<8x32xf32>
    %144 = tpu.matmul %141, %143, %cst_55 {dimension_numbers = #tpu.dot_dimension_numbers<[1], [0], [0], [1], [0, 0, 1, 1], [], []>} : vector<8x32xf32>, vector<32x32xf32>, vector<8x32xf32> -> vector<8x32xf32>
    %145 = arith.addf %140, %144 : vector<8x32xf32>
    %c0_56 = arith.constant 0 : index
    %c0_57 = arith.constant 0 : index
    %c0_58 = arith.constant 0 : index
    %146 = vector.load %arg7[%c0_56, %c0_57, %c0_58] : memref<1x8x32xf32, #tpu.memory_space<vmem>>, vector<1x8x32xf32>
    %147 = vector.shape_cast %146 : vector<1x8x32xf32> to vector<8x32xf32>
    %148 = vector.shape_cast %145 : vector<8x32xf32> to vector<1x8x32xf32>
    tpu.vector_store %arg7[%c0_56, %c0_57, %c0_58], %148 {strides = array<i32>} : memref<1x8x32xf32, #tpu.memory_space<vmem>>, vector<1x8x32xf32>,
    return
  }
  func.func @transform_0(%arg0: i32, %arg1: i32, %arg2: i32) -> (i32, i32, i32) {
    %c0_i32 = arith.constant 0 : i32
    %c0_i32_0 = arith.constant 0 : i32
    %c0_i32_1 = arith.constant 0 : i32
    return %arg0, %c0_i32, %c0_i32_0 : i32, i32, i32
  }
  func.func @transform_1(%arg0: i32, %arg1: i32, %arg2: i32) -> (i32, i32, i32) {
    %c0_i32 = arith.constant 0 : i32
    %c0_i32_0 = arith.constant 0 : i32
    %c0_i32_1 = arith.constant 0 : i32
    return %arg2, %c0_i32, %c0_i32_0 : i32, i32, i32
  }
  func.func @transform_2(%arg0: i32, %arg1: i32, %arg2: i32) -> (i32, i32, i32) {
    %c0_i32 = arith.constant 0 : i32
    %c0_i32_0 = arith.constant 0 : i32
    %c0_i32_1 = arith.constant 0 : i32
    return %arg2, %c0_i32, %c0_i32_0 : i32, i32, i32
  }
  func.func @transform_3(%arg0: i32, %arg1: i32, %arg2: i32) -> (i32, i32) {
    %c0_i32 = arith.constant 0 : i32
    %c0_i32_0 = arith.constant 0 : i32
    %c0_i32_1 = arith.constant 0 : i32
    return %c0_i32, %c0_i32_0 : i32, i32
  }
  func.func @transform_4(%arg0: i32, %arg1: i32, %arg2: i32) -> (i32, i32, i32) {
    %c0_i32 = arith.constant 0 : i32
    %c0_i32_0 = arith.constant 0 : i32
    return %arg0, %arg1, %c0_i32 : i32, i32, i32
  }
}

</mosaic_0001>

<llo_original>
// kernel: tpu_custom_call.1
$region0: #{tpu_custom_call.1}
  #allocation0 [shape = 'u32[]', space=smem, size = 0x4, offset = 0x4, fixed_abs, tag = 'smem constant byte address 0x4 - core index']
  #allocation1 [shape = 'u32[144,128]{1,0:T(1,128)}', space=vmem, size = 0x12000, scoped, tag = 'internal scratch']
  #allocation2 [shape = 'f32[8,32]{1,0:T(8,128)}', space=vmem, size = 0x1000, scoped, tag = 'scratch operand']
  %s0 = inlined_call_operand.hbm [shape: f32[2,8,32], index: 0, kind: input, shape index: {}]
  %s1 = inlined_call_operand.hbm [shape: f32[1,32,96], index: 1, kind: input, shape index: {}]
  %s2 = inlined_call_operand.hbm [shape: f32[1,32,32], index: 2, kind: input, shape index: {}]
  %s3 = inlined_call_operand.vmem [shape: f32[1,32], index: 3, kind: input, shape index: {}]
  %s4 = inlined_call_operand.hbm [shape: f32[2,8,32], index: 4, kind: output, shape index: {}]
  %s5 = sld [smem:[#allocation0]]
  $region65: #{tpu_custom_call.1} parent=0
    _
  %s7 = ssub.s32 1, %s5
  %s8 = scalar_select 0, %s7, %s5
  $region1: #{tpu_custom_call.1} parent=0
    #allocation3 [shape = 'u8[8192]{0}', space=vmem, size = 0x2000, scoped, tag = 'input window, operand 0']
    #allocation4 [shape = 's32[2]{0}', space=sflag, size = 0x8, scoped, tag = 'scoped memory for tpu_custom_call.1']
    #allocation5 [shape = 's32[2]{0}', space=sflag, size = 0x8, scoped, tag = 'scoped memory for tpu_custom_call.1']
    #allocation6 [shape = 'u8[16384]{0}', space=vmem, size = 0x4000, scoped, tag = 'input window, operand 1, single buffered']
    #allocation7 [shape = 's32[1]{0}', space=sflag, size = 0x4, scoped, tag = 'scoped memory for tpu_custom_call.1']
    #allocation8 [shape = 'u8[16384]{0}', space=vmem, size = 0x4000, scoped, tag = 'input window, operand 2, single buffered']
    #allocation9 [shape = 'u8[8192]{0}', space=vmem, size = 0x2000, scoped, tag = 'output window, operand 0']
    %9 = vsyncpa [#allocation4], 0
    %s10 = scalar_lea.sflag [#allocation4], 1
    %11 = vsyncpa %s10, 0
    %12 = vsyncpa [#allocation7], 0
    %13 = vsyncpa [#allocation5], 0
    %s14 = scalar_lea.sflag [#allocation5], 1
    %15 = vsyncpa %s14, 0
    loop: start=0, step=1, limit=4
    $region2: #{tpu_custom_call.1} parent=1 // loop_pre_header
      _
    $region3: #{tpu_custom_call.1} parent=1 // loop_header
      %s17 = sphi 0, %s21
      %p18 = scmp.ge.s32.totalorder %s17, 4
      %s24 = sphi 0, %s43
      %s25 = sphi 0, %s39
      %s26 = sphi 0, %s35
      %s27 = sphi 0, %s24
      %s28 = sphi 0, %s25
      %s29 = sphi 0, %s26
      %s30 = sphi 0, %s27
      %s31 = sphi 0, %s28
      %s32 = sphi 0, %s29
      %s46 = sphi 0, %s48
      %s49 = sphi 0, %s46
      %s50 = sphi 0, %s49
      %s66 = sphi 0, %s50
      %s72 = sphi 0, %s74
      %s75 = sphi 0, %s72
      %s76 = sphi 0, %s75
      %s92 = sphi 0, %s76
      %s98 = sphi 0, %s100
      %s101 = sphi 0, %s98
      %s102 = sphi 0, %s101
      %s118 = sphi 0, %s102
      %s122 = sphi 0, %s122
      %s124 = sphi 0, %s122
      %s125 = sphi 0, %s124
      %s139 = sphi 0, %s125
      %s147 = sphi 0, %s149
      %s150 = sphi 0, %s147
      %s151 = sphi 0, %s150
      %s167 = sphi 0, %s151
    $region4: #{tpu_custom_call.1} parent=1 // loop_header_branch
      %20 = sbr.rel (%p18) target = $region8
    $region5: #{tpu_custom_call.1} parent=1 // loop_body
      %s22 = ssub.s32 %s17, 1
      %s23 = ssub.s32 %s17, 2
      %s33 = sadd.s32 1, %s26
      %p34 = scmp.ge.s32.totalorder %s33, 1
      %s35 = scalar_select %p34, 0, %s33
      %s36 = sadd.s32 1, %s25
      %s37 = scalar_select %p34, %s36, %s25
      %p38 = scmp.ge.s32.totalorder %s37, 1
      %s39 = scalar_select %p38, 0, %s37
      %s40 = sadd.s32 1, %s24
      %s41 = scalar_select %p38, %s40, %s24
      %p42 = scmp.ge.s32.totalorder %s41, 2
      %s43 = scalar_select %p42, 0, %s41
      %s44 = ssub.s32 %s24, %s43
      %p45 = scmp.eq.s32.totalorder %s44, 0
      %s47 = sadd.s32 %s46, 1
      %s48 = scalar_select %p45, %s46, %s47
      %p51 = pneg %p45
      %p52 = scmp.eq.s32.totalorder %s17, 1
      %p53 = por %p51, %p52
      %p54 = scmp.ne.s32.totalorder %s46, %s49
      %p55 = scmp.eq.s32.totalorder %s17, 0
      %p56 = por %p54, %p55
      %p57 = scmp.ne.s32.totalorder %s46, %s49
      %p58 = scmp.eq.s32.totalorder %s22, 1
      %p59 = por %p57, %p58
      %p60 = scmp.ne.s32.totalorder %s49, %s50
      %p61 = scmp.eq.s32.totalorder %s22, 0
      %p62 = por %p60, %p61
      %p63 = scmp.ne.s32.totalorder %s49, %s50
      %p64 = scmp.eq.s32.totalorder %s23, 1
      %p65 = por %p63, %p64
      %p67 = scmp.ne.s32.totalorder %s50, %s66
      %p68 = scmp.eq.s32.totalorder %s23, 0
      %p69 = por %p67, %p68
      %s70 = ssub.s32 %s26, %s35
      %p71 = scmp.eq.s32.totalorder %s70, 0
      %s73 = sadd.s32 %s72, 1
      %s74 = scalar_select %p71, %s72, %s73
      %p77 = pneg %p71
      %p78 = scmp.eq.s32.totalorder %s17, 1
      %p79 = por %p77, %p78
      %p80 = scmp.ne.s32.totalorder %s72, %s75
      %p81 = scmp.eq.s32.totalorder %s17, 0
      %p82 = por %p80, %p81
      %p83 = scmp.ne.s32.totalorder %s72, %s75
      %p84 = scmp.eq.s32.totalorder %s22, 1
      %p85 = por %p83, %p84
      %p86 = scmp.ne.s32.totalorder %s75, %s76
      %p87 = scmp.eq.s32.totalorder %s22, 0
      %p88 = por %p86, %p87
      %p89 = scmp.ne.s32.totalorder %s75, %s76
      %p90 = scmp.eq.s32.totalorder %s23, 1
      %p91 = por %p89, %p90
      %p93 = scmp.ne.s32.totalorder %s76, %s92
      %p94 = scmp.eq.s32.totalorder %s23, 0
      %p95 = por %p93, %p94
      %s96 = ssub.s32 %s26, %s35
      %p97 = scmp.eq.s32.totalorder %s96, 0
      %s99 = sadd.s32 %s98, 1
      %s100 = scalar_select %p97, %s98, %s99
      %p103 = pneg %p97
      %p104 = scmp.eq.s32.totalorder %s17, 1
      %p105 = por %p103, %p104
      %p106 = scmp.ne.s32.totalorder %s98, %s101
      %p107 = scmp.eq.s32.totalorder %s17, 0
      %p108 = por %p106, %p107
      %p109 = scmp.ne.s32.totalorder %s98, %s101
      %p110 = scmp.eq.s32.totalorder %s22, 1
      %p111 = por %p109, %p110
      %p112 = scmp.ne.s32.totalorder %s101, %s102
      %p113 = scmp.eq.s32.totalorder %s22, 0
      %p114 = por %p112, %p113
      %p115 = scmp.ne.s32.totalorder %s101, %s102
      %p116 = scmp.eq.s32.totalorder %s23, 1
      %p117 = por %p115, %p116
      %p119 = scmp.ne.s32.totalorder %s102, %s118
      %p120 = scmp.eq.s32.totalorder %s23, 0
      %p121 = por %p119, %p120
      %s123 = sadd.s32 %s122, 1
      %p126 = scmp.eq.s32.totalorder %s17, 1
      %p127 = scmp.ne.s32.totalorder %s122, %s124
      %p128 = scmp.eq.s32.totalorder %s17, 0
      %p129 = por %p127, %p128
      %p130 = scmp.ne.s32.totalorder %s122, %s124
      %p131 = scmp.eq.s32.totalorder %s22, 1
      %p132 = por %p130, %p131
      %p133 = scmp.ne.s32.totalorder %s124, %s125
      %p134 = scmp.eq.s32.totalorder %s22, 0
      %p135 = por %p133, %p134
      %p136 = scmp.ne.s32.totalorder %s124, %s125
      %p137 = scmp.eq.s32.totalorder %s23, 1
      %p138 = por %p136, %p137
      %p140 = scmp.ne.s32.totalorder %s125, %s139
      %p141 = scmp.eq.s32.totalorder %s23, 0
      %p142 = por %p140, %p141
      %s143 = ssub.s32 %s24, %s43
      %s144 = ssub.s32 %s25, %s39
      %s145 = sor.u32 %s143, %s144
      %p146 = scmp.eq.s32.totalorder %s145, 0
      %s148 = sadd.s32 %s147, 1
      %s149 = scalar_select %p146, %s147, %s148
      %p152 = pneg %p146
      %p153 = scmp.eq.s32.totalorder %s17, 1
      %p154 = por %p152, %p153
      %p155 = scmp.ne.s32.totalorder %s147, %s150
      %p156 = scmp.eq.s32.totalorder %s17, 0
      %p157 = por %p155, %p156
      %p158 = scmp.ne.s32.totalorder %s147, %s150
      %p159 = scmp.eq.s32.totalorder %s22, 1
      %p160 = por %p158, %p159
      %p161 = scmp.ne.s32.totalorder %s150, %s151
      %p162 = scmp.eq.s32.totalorder %s22, 0
      %p163 = por %p161, %p162
      %p164 = scmp.ne.s32.totalorder %s150, %s151
      %p165 = scmp.eq.s32.totalorder %s23, 1
      %p166 = por %p164, %p165
      %p168 = scmp.ne.s32.totalorder %s151, %s167
      %p169 = scmp.eq.s32.totalorder %s23, 0
      %p170 = por %p168, %p169
      %p171 = scmp.le.s32.totalorder 1, %s17
      %p172 = scmp.lt.s32.totalorder %s17, 3
      %p173 = pnand %p171, %p172
      %p174 = pneg %p173
      // Predicated region
      $region9: #{tpu_custom_call.1} parent=5 // pred_check
        _
      $region10: #{tpu_custom_call.1} parent=5 // pred_check_branch
        %176 = sbr.rel (%p173) target = $region12
      $region11: #{tpu_custom_call.1} parent=5 // pred_region
        %s177 = ssub.s32 %s17, 1
        // Predicated region
        $region13: #{tpu_custom_call.1} parent=11 // pred_check
          %p178 = pneg %p88
        $region14: #{tpu_custom_call.1} parent=11 // pred_check_branch
          %180 = sbr.rel (%p178) target = $region16
        $region15: #{tpu_custom_call.1} parent=11 // pred_region
          %s182 = ssub.s32 512, 512
          %183 = vsyncadd [#allocation7], %s182
          %s184 = smul.addr %s29, 4
          %s185 = smul.addr %s184, 128
          %s186 = scalar_lea.hbm %s1, %s185
          %s187 = sshll.u32 [#allocation6], 4
          %s188 = int_to_ptr.vmem [resolvable:$true] %s187
          %193 = dma.hbm_to_vmem [thread:$0]  %s186, 512, %s188, [#allocation7], 128, 128, 8
        $region16: #{tpu_custom_call.1} parent=11 // pred_fallthru
          _
        // Predicated region
        $region17: #{tpu_custom_call.1} parent=11 // pred_check
          %p194 = pneg %p114
        $region18: #{tpu_custom_call.1} parent=11 // pred_check_branch
          %196 = sbr.rel (%p194) target = $region20
        $region19: #{tpu_custom_call.1} parent=11 // pred_region
          %s198 = ssub.s32 512, 512
          %199 = vsyncadd [#allocation7], %s198
          %s200 = smul.addr %s29, 4
          %s201 = smul.addr %s200, 128
          %s202 = scalar_lea.hbm %s2, %s201
          %s203 = sshll.u32 [#allocation8], 4
          %s204 = int_to_ptr.vmem [resolvable:$true] %s203
          %209 = dma.hbm_to_vmem [thread:$0]  %s202, 512, %s204, [#allocation7], 128, 128, 8
        $region20: #{tpu_custom_call.1} parent=11 // pred_fallthru
          _
        // Predicated region
        $region21: #{tpu_custom_call.1} parent=11 // pred_check
          %p210 = pneg %p135
        $region22: #{tpu_custom_call.1} parent=11 // pred_check_branch
          %212 = sbr.rel (%p210) target = $region24
        $region23: #{tpu_custom_call.1} parent=11 // pred_region
          _
        $region24: #{tpu_custom_call.1} parent=11 // pred_fallthru
          _
      $region12: #{tpu_custom_call.1} parent=5 // pred_fallthru
        _
      %p213 = scmp.lt.s32.totalorder %s17, 2
      // Predicated region
      $region25: #{tpu_custom_call.1} parent=5 // pred_check
        %p214 = pneg %p213
      $region26: #{tpu_custom_call.1} parent=5 // pred_check_branch
        %216 = sbr.rel (%p214) target = $region28
      $region27: #{tpu_custom_call.1} parent=5 // pred_region
        // Predicated region
        $region29: #{tpu_custom_call.1} parent=27 // pred_check
          %p217 = pneg %p56
        $region30: #{tpu_custom_call.1} parent=27 // pred_check_branch
          %219 = sbr.rel (%p217) target = $region32
        $region31: #{tpu_custom_call.1} parent=27 // pred_region
          %s220 = sand.u32 %s46, 1
          %s221 = scalar_lea.sflag [#allocation4], %s220
          %s222 = sand.u32 %s46, 1
          %s223 = smul.addr %s222, 8
          %s224 = scalar_lea.vmem [#allocation3], %s223
          %s226 = ssub.s32 128, 128
          %227 = vsyncadd %s221, %s226
          %s228 = smul.addr %s24, 128
          %s229 = scalar_lea.hbm %s0, %s228
          %s231 = sshll.u32 %s224, 4
          %s232 = int_to_ptr.vmem [resolvable:$true] %s231
          %234 = dma.hbm_to_vmem [thread:$0]  %s229, 128, %s232, %s221
        $region32: #{tpu_custom_call.1} parent=27 // pred_fallthru
          _
      $region28: #{tpu_custom_call.1} parent=5 // pred_fallthru
        _
      %p235 = scmp.le.s32.totalorder 1, %s17
      %p236 = scmp.lt.s32.totalorder %s17, 3
      %p237 = pnand %p235, %p236
      %p238 = pneg %p237
      // Predicated region
      $region33: #{tpu_custom_call.1} parent=5 // pred_check
        _
      $region34: #{tpu_custom_call.1} parent=5 // pred_check_branch
        %240 = sbr.rel (%p237) target = $region36
      $region35: #{tpu_custom_call.1} parent=5 // pred_region
        %s241 = ssub.s32 %s17, 1
        %s242 = sand.u32 %s49, 1
        %s243 = scalar_lea.sflag [#allocation4], %s242
        %s244 = sand.u32 %s49, 1
        %s245 = smul.addr %s244, 8
        %s246 = scalar_lea.vmem [#allocation3], %s245
        // Predicated region
        $region37: #{tpu_custom_call.1} parent=35 // pred_check
          %p247 = pneg %p62
        $region38: #{tpu_custom_call.1} parent=35 // pred_check_branch
          %249 = sbr.rel (%p247) target = $region40
        $region39: #{tpu_custom_call.1} parent=35 // pred_region
          %250 = dma.done %s243, 128
        $region40: #{tpu_custom_call.1} parent=35 // pred_fallthru
          _
        // Predicated region
        $region41: #{tpu_custom_call.1} parent=35 // pred_check
          %p251 = pneg %p88
        $region42: #{tpu_custom_call.1} parent=35 // pred_check_branch
          %253 = sbr.rel (%p251) target = $region44
        $region43: #{tpu_custom_call.1} parent=35 // pred_region
          %254 = dma.done [#allocation7], 512
        $region44: #{tpu_custom_call.1} parent=35 // pred_fallthru
          _
        // Predicated region
        $region45: #{tpu_custom_call.1} parent=35 // pred_check
          %p255 = pneg %p114
        $region46: #{tpu_custom_call.1} parent=35 // pred_check_branch
          %257 = sbr.rel (%p255) target = $region48
        $region47: #{tpu_custom_call.1} parent=35 // pred_region
          %258 = dma.done [#allocation7], 512
        $region48: #{tpu_custom_call.1} parent=35 // pred_fallthru
          _
        %s259 = sand.u32 %s49, 1
        %s260 = scalar_lea.sflag [#allocation4], %s259
        %s261 = sand.u32 %s49, 1
        %s262 = smul.addr %s261, 8
        %s263 = scalar_lea.vmem [#allocation3], %s262
        %p264 = pneg %p62
        %p265 = pneg %p59
        %p266 = pneg %p88
        %p267 = pneg %p85
        %p268 = pneg %p114
        %p269 = pneg %p111
        %p270 = pneg %p135
        %p271 = pneg %p132
        %p272 = pneg %p163
        %p273 = pneg %p160
        %s274 = sand.u32 %s150, 1
        %s275 = scalar_lea.sflag [#allocation5], %s274
        %s276 = sand.u32 %s150, 1
        %s277 = smul.addr %s276, 8
        %s278 = scalar_lea.vmem [#allocation9], %s277
        %p279 = scmp.eq.s32.totalorder %s29, 0
        // Predicated region
        $region49: #{tpu_custom_call.1} parent=35 // pred_check
          %p280 = pneg %p279
        $region50: #{tpu_custom_call.1} parent=35 // pred_check_branch
          %282 = sbr.rel (%p280) target = $region52
        $region51: #{tpu_custom_call.1} parent=35 // pred_region
          %v283 = vld [vmem:[%s3] sm:$0x1]
          %v285 = vlaneseq
          %v286 = vshrl.u32 %v285, 7
          %v287 = vsub.s32 0, %v286
          %v288 = vrot.slane %v283, %v287
          %vm290 = vcmask 261120
          %291 = vst.msk [vmem:[%s278] sm:$0xff] %vm290, %v288
        $region52: #{tpu_custom_call.1} parent=35 // pred_fallthru
          _
        %v292 = vld [vmem:[%s246] sm:$0xff]
        %v293 = vld [vmem:[#allocation6] sm:$0xff]
        %v294 = vld [vmem:[#allocation6 + $0x8] sm:$0xff]
        %v295 = vld [vmem:[#allocation6 + $0x10] sm:$0xff]
        %v296 = vld [vmem:[#allocation6 + $0x18] sm:$0xff]
        %vm297 = vcmask 261120
        %v299 = vsel %vm297, %v292, 0
        %301 = vmatprep.subr.mxu0 0.0
        %302 = vmatpush1.msra.mxu0 %v293
        %303 = vmatprep.subr.mxu0 0.0
        %304 = vmatpush1.msra.mxu0 %v294
        %305 = vmatprep.subr.mxu0 0.0
        %306 = vmatpush1.msra.mxu0 %v295
        %307 = vmatprep.subr.mxu0 0.0
        %308 = vmatpush1.msra.mxu0 %v296
        %309 = vmatprep.subr.mxu0 0.0
        %310 = vmatpush1.msra.mxu0 0.0
        %311 = vmatprep.subr.mxu0 0.0
        %312 = vmatpush1.msra.mxu0 0.0
        %313 = vmatprep.subr.mxu0 0.0
        %314 = vmatpush1.msra.mxu0 0.0
        %315 = vmatprep.subr.mxu0 0.0
        %316 = vmatpush1.msra.mxu0 0.0
        %317 = vmatprep.subr.mxu0 0.0
        %318 = vmatpush1.msra.mxu0 0.0
        %319 = vmatprep.subr.mxu0 0.0
        %320 = vmatpush1.msra.mxu0 0.0
        %321 = vmatprep.subr.mxu0 0.0
        %322 = vmatpush1.msra.mxu0 0.0
        %323 = vmatprep.subr.mxu0 0.0
        %324 = vmatpush1.msra.mxu0 0.0
        %325 = vmatprep.subr.mxu0 0.0
        %326 = vmatpush1.msra.mxu0 0.0
        %327 = vmatprep.subr.mxu0 0.0
        %328 = vmatpush1.msra.mxu0 0.0
        %329 = vmatprep.subr.mxu0 0.0
        %330 = vmatpush1.msra.mxu0 0.0
        %331 = vmatprep.subr.mxu0 0.0
        %332 = vmatpush1.msra.mxu0 0.0
        %333 = vmatprep.subr.mxu0 0.0
        %334 = vmatpush1.msra.mxu0 0.0
        %335 = vmatprep.subr.mxu0 0.0
        %336 = vmatpush1.msra.mxu0 0.0
        %337 = vmatprep.subr.mxu0 0.0
        %338 = vmatpush1.msra.mxu0 0.0
        %339 = vmatprep.subr.mxu0 0.0
        %340 = vmatpush1.msra.mxu0 0.0
        %341 = vmatprep.subr.mxu0 0.0
        %342 = vmatpush1.msra.mxu0 0.0
        %343 = vmatprep.subr.mxu0 0.0
        %344 = vmatpush1.msra.mxu0 0.0
        %345 = vmatprep.subr.mxu0 0.0
        %346 = vmatpush1.msra.mxu0 0.0
        %347 = vmatprep.subr.mxu0 0.0
        %348 = vmatpush1.msra.mxu0 0.0
        %349 = vmatprep.subr.mxu0 0.0
        %350 = vmatpush1.msra.mxu0 0.0
        %351 = vmatprep.subr.mxu0 0.0
        %352 = vmatpush1.msra.mxu0 0.0
        %353 = vmatprep.subr.mxu0 0.0
        %354 = vmatpush1.msra.mxu0 0.0
        %355 = vmatprep.subr.mxu0 0.0
        %356 = vmatpush1.msra.mxu0 0.0
        %357 = vmatprep.subr.mxu0 0.0
        %358 = vmatpush1.msra.mxu0 0.0
        %359 = vmatprep.subr.mxu0 0.0
        %360 = vmatpush1.msra.mxu0 0.0
        %361 = vmatprep.subr.mxu0 0.0
        %362 = vmatpush1.msra.mxu0 0.0
        %363 = vmatprep.subr.mxu0 0.0
        %364 = vmatpush1.msra.mxu0 0.0
        %365 = vmatprep.mubr.f32.mxu0 0.0
        %366 = vmatmul.mubr.f32.gmra.mrb[0].mxu0 %v299
        %v367 = vpop.f32.mrb[0].mxu0
        %v368 = vadd.f32 0.0, %v367
        %v369 = vpop.f32.mrb[0].mxu0
        %370 = vdwg.mxu0
        %372 = vrot.lane.b32.xlu0 %v368, 96
        %v373 = vpop.permute.xlu0 %372
        %vm374 = vcmask 31744
        %v375 = vsel %vm374, %v368, 0
        %v377 = vsel %vm374, %v373, 0
        %379 = vmatprep.subr.mxu0 0.0
        %380 = vmatpush1.xpose.msra.mxu0 %v377
        %381 = vmatprep.subr.mxu0 0.0
        %382 = vmatpush1.xpose.msra.mxu0 0.0
        %383 = vmatprep.subr.mxu0 0.0
        %384 = vmatpush1.xpose.msra.mxu0 0.0
        %385 = vmatprep.subr.mxu0 0.0
        %386 = vmatpush1.xpose.msra.mxu0 0.0
        %387 = vmatprep.subr.mxu0 0.0
        %388 = vmatpush1.xpose.msra.mxu0 0.0
        %389 = vmatprep.subr.mxu0 0.0
        %390 = vmatpush1.xpose.msra.mxu0 0.0
        %391 = vmatprep.subr.mxu0 0.0
        %392 = vmatpush1.xpose.msra.mxu0 0.0
        %393 = vmatprep.subr.mxu0 0.0
        %394 = vmatpush1.xpose.msra.mxu0 0.0
        %395 = vmatprep.subr.mxu0 0.0
        %396 = vmatpush1.xpose.msra.mxu0 0.0
        %397 = vmatprep.subr.mxu0 0.0
        %398 = vmatpush1.xpose.msra.mxu0 0.0
        %399 = vmatprep.subr.mxu0 0.0
        %400 = vmatpush1.xpose.msra.mxu0 0.0
        %401 = vmatprep.subr.mxu0 0.0
        %402 = vmatpush1.xpose.msra.mxu0 0.0
        %403 = vmatprep.subr.mxu0 0.0
        %404 = vmatpush1.xpose.msra.mxu0 0.0
        %405 = vmatprep.subr.mxu0 0.0
        %406 = vmatpush1.xpose.msra.mxu0 0.0
        %407 = vmatprep.subr.mxu0 0.0
        %408 = vmatpush1.xpose.msra.mxu0 0.0
        %409 = vmatprep.subr.mxu0 0.0
        %410 = vmatpush1.xpose.msra.mxu0 0.0
        %411 = vmatprep.subr.mxu0 0.0
        %412 = vmatpush1.xpose.msra.mxu0 0.0
        %413 = vmatprep.subr.mxu0 0.0
        %414 = vmatpush1.xpose.msra.mxu0 0.0
        %415 = vmatprep.subr.mxu0 0.0
        %416 = vmatpush1.xpose.msra.mxu0 0.0
        %417 = vmatprep.subr.mxu0 0.0
        %418 = vmatpush1.xpose.msra.mxu0 0.0
        %419 = vmatprep.subr.mxu0 0.0
        %420 = vmatpush1.xpose.msra.mxu0 0.0
        %421 = vmatprep.subr.mxu0 0.0
        %422 = vmatpush1.xpose.msra.mxu0 0.0
        %423 = vmatprep.subr.mxu0 0.0
        %424 = vmatpush1.xpose.msra.mxu0 0.0
        %425 = vmatprep.subr.mxu0 0.0
        %426 = vmatpush1.xpose.msra.mxu0 0.0
        %427 = vmatprep.subr.mxu0 0.0
        %428 = vmatpush1.xpose.msra.mxu0 0.0
        %429 = vmatprep.subr.mxu0 0.0
        %430 = vmatpush1.xpose.msra.mxu0 0.0
        %431 = vmatprep.subr.mxu0 0.0
        %432 = vmatpush1.xpose.msra.mxu0 0.0
        %433 = vmatprep.subr.mxu0 0.0
        %434 = vmatpush1.xpose.msra.mxu0 0.0
        %435 = vmatprep.subr.mxu0 0.0
        %436 = vmatpush1.xpose.msra.mxu0 0.0
        %437 = vmatprep.subr.mxu0 0.0
        %438 = vmatpush1.xpose.msra.mxu0 0.0
        %439 = vmatprep.subr.mxu0 0.0
        %440 = vmatpush1.xpose.msra.mxu0 0.0
        %441 = vmatprep.subr.mxu0 0.0
        %442 = vmatpush1.xpose.msra.mxu0 0.0
        %443 = vmatprep.mubr.f32.mxu0 0.0
        %444 = vmatmul.mubr.f32.gmra.mrb[0].mxu0 %v375
        %v445 = vpop.f32.mrb[0].mxu0
        %v446 = vadd.f32 0.0, %v445
        %v447 = vpop.f32.mrb[0].mxu0
        %448 = vdwg.mxu0
        %vm449 = vcmask 64512
        %v450 = vsel %vm449, %v446, -inf
        %451 = vmax.xlane.f32.xlu0 %v450
        %v452 = vpop.xlane.xlu0 %451
        %v453 = vsub.f32 %v446, %v452
        %v454 = vmul.f32 %v453, 1.442695
        %v455 = vpow.pop %v454
        %v456 = vsel %vm449, %v455, 0.0
        %457 = vadd.xlane.f32.xlu0 %v456
        %v458 = vpop.xlane.xlu0 %457
        %459 = vrot.lane.b32.xlu0 %v368, 64
        %v460 = vpop.permute.xlu0 %459
        %v463 = vsel %vm449, %v455, 0
        %465 = vmatprep.subr.mxu0 0.0
        %466 = vmatpush1.msra.mxu0 %v460
        %467 = vmatprep.subr.mxu0 0.0
        %468 = vmatpush1.msra.mxu0 0.0
        %469 = vmatprep.subr.mxu0 0.0
        %470 = vmatpush1.msra.mxu0 0.0
        %471 = vmatprep.subr.mxu0 0.0
        %472 = vmatpush1.msra.mxu0 0.0
        %473 = vmatprep.subr.mxu0 0.0
        %474 = vmatpush1.msra.mxu0 0.0
        %475 = vmatprep.subr.mxu0 0.0
        %476 = vmatpush1.msra.mxu0 0.0
        %477 = vmatprep.subr.mxu0 0.0
        %478 = vmatpush1.msra.mxu0 0.0
        %479 = vmatprep.subr.mxu0 0.0
        %480 = vmatpush1.msra.mxu0 0.0
        %481 = vmatprep.subr.mxu0 0.0
        %482 = vmatpush1.msra.mxu0 0.0
        %483 = vmatprep.subr.mxu0 0.0
        %484 = vmatpush1.msra.mxu0 0.0
        %485 = vmatprep.subr.mxu0 0.0
        %486 = vmatpush1.msra.mxu0 0.0
        %487 = vmatprep.subr.mxu0 0.0
        %488 = vmatpush1.msra.mxu0 0.0
        %489 = vmatprep.subr.mxu0 0.0
        %490 = vmatpush1.msra.mxu0 0.0
        %491 = vmatprep.subr.mxu0 0.0
        %492 = vmatpush1.msra.mxu0 0.0
        %493 = vmatprep.subr.mxu0 0.0
        %494 = vmatpush1.msra.mxu0 0.0
        %495 = vmatprep.subr.mxu0 0.0
        %496 = vmatpush1.msra.mxu0 0.0
        %497 = vmatprep.subr.mxu0 0.0
        %498 = vmatpush1.msra.mxu0 0.0
        %499 = vmatprep.subr.mxu0 0.0
        %500 = vmatpush1.msra.mxu0 0.0
        %501 = vmatprep.subr.mxu0 0.0
        %502 = vmatpush1.msra.mxu0 0.0
        %503 = vmatprep.subr.mxu0 0.0
        %504 = vmatpush1.msra.mxu0 0.0
        %505 = vmatprep.subr.mxu0 0.0
        %506 = vmatpush1.msra.mxu0 0.0
        %507 = vmatprep.subr.mxu0 0.0
        %508 = vmatpush1.msra.mxu0 0.0
        %509 = vmatprep.subr.mxu0 0.0
        %510 = vmatpush1.msra.mxu0 0.0
        %511 = vmatprep.subr.mxu0 0.0
        %512 = vmatpush1.msra.mxu0 0.0
        %513 = vmatprep.subr.mxu0 0.0
        %514 = vmatpush1.msra.mxu0 0.0
        %515 = vmatprep.subr.mxu0 0.0
        %516 = vmatpush1.msra.mxu0 0.0
        %517 = vmatprep.subr.mxu0 0.0
        %518 = vmatpush1.msra.mxu0 0.0
        %519 = vmatprep.subr.mxu0 0.0
        %520 = vmatpush1.msra.mxu0 0.0
        %521 = vmatprep.subr.mxu0 0.0
        %522 = vmatpush1.msra.mxu0 0.0
        %523 = vmatprep.subr.mxu0 0.0
        %524 = vmatpush1.msra.mxu0 0.0
        %525 = vmatprep.subr.mxu0 0.0
        %526 = vmatpush1.msra.mxu0 0.0
        %527 = vmatprep.subr.mxu0 0.0
        %528 = vmatpush1.msra.mxu0 0.0
        %529 = vmatprep.mubr.f32.mxu0 0.0
        %530 = vmatmul.mubr.f32.gmra.mrb[0].mxu0 %v463
        %v531 = vpop.f32.mrb[0].mxu0
        %v532 = vadd.f32 0.0, %v531
        %v533 = vpop.f32.mrb[0].mxu0
        %534 = vdwg.mxu0
        %v535 = vrcp.pop %v458
        %v536 = vmul.f32 %v532, %v535
        %537 = vst.msk [vmem:[#allocation2] sm:$0xff] %vm374, %v536
        %538 = vrot.lane.b32.xlu0 %v368, 124
        %v539 = vpop.permute.xlu0 %538
        %540 = vrot.lane.b32.xlu0 %v368, 92
        %v541 = vpop.permute.xlu0 %540
        %v542 = vsel %vm374, %v539, 0
        %v544 = vsel %vm374, %v541, 0
        %546 = vmatprep.subr.mxu0 0.0
        %547 = vmatpush1.xpose.msra.mxu0 %v544
        %548 = vmatprep.subr.mxu0 0.0
        %549 = vmatpush1.xpose.msra.mxu0 0.0
        %550 = vmatprep.subr.mxu0 0.0
        %551 = vmatpush1.xpose.msra.mxu0 0.0
        %552 = vmatprep.subr.mxu0 0.0
        %553 = vmatpush1.xpose.msra.mxu0 0.0
        %554 = vmatprep.subr.mxu0 0.0
        %555 = vmatpush1.xpose.msra.mxu0 0.0
        %556 = vmatprep.subr.mxu0 0.0
        %557 = vmatpush1.xpose.msra.mxu0 0.0
        %558 = vmatprep.subr.mxu0 0.0
        %559 = vmatpush1.xpose.msra.mxu0 0.0
        %560 = vmatprep.subr.mxu0 0.0
        %561 = vmatpush1.xpose.msra.mxu0 0.0
        %562 = vmatprep.subr.mxu0 0.0
        %563 = vmatpush1.xpose.msra.mxu0 0.0
        %564 = vmatprep.subr.mxu0 0.0
        %565 = vmatpush1.xpose.msra.mxu0 0.0
        %566 = vmatprep.subr.mxu0 0.0
        %567 = vmatpush1.xpose.msra.mxu0 0.0
        %568 = vmatprep.subr.mxu0 0.0
        %569 = vmatpush1.xpose.msra.mxu0 0.0
        %570 = vmatprep.subr.mxu0 0.0
        %571 = vmatpush1.xpose.msra.mxu0 0.0
        %572 = vmatprep.subr.mxu0 0.0
        %573 = vmatpush1.xpose.msra.mxu0 0.0
        %574 = vmatprep.subr.mxu0 0.0
        %575 = vmatpush1.xpose.msra.mxu0 0.0
        %576 = vmatprep.subr.mxu0 0.0
        %577 = vmatpush1.xpose.msra.mxu0 0.0
        %578 = vmatprep.subr.mxu0 0.0
        %579 = vmatpush1.xpose.msra.mxu0 0.0
        %580 = vmatprep.subr.mxu0 0.0
        %581 = vmatpush1.xpose.msra.mxu0 0.0
        %582 = vmatprep.subr.mxu0 0.0
        %583 = vmatpush1.xpose.msra.mxu0 0.0
        %584 = vmatprep.subr.mxu0 0.0
        %585 = vmatpush1.xpose.msra.mxu0 0.0
        %586 = vmatprep.subr.mxu0 0.0
        %587 = vmatpush1.xpose.msra.mxu0 0.0
        %588 = vmatprep.subr.mxu0 0.0
        %589 = vmatpush1.xpose.msra.mxu0 0.0
        %590 = vmatprep.subr.mxu0 0.0
        %591 = vmatpush1.xpose.msra.mxu0 0.0
        %592 = vmatprep.subr.mxu0 0.0
        %593 = vmatpush1.xpose.msra.mxu0 0.0
        %594 = vmatprep.subr.mxu0 0.0
        %595 = vmatpush1.xpose.msra.mxu0 0.0
        %596 = vmatprep.subr.mxu0 0.0
        %597 = vmatpush1.xpose.msra.mxu0 0.0
        %598 = vmatprep.subr.mxu0 0.0
        %599 = vmatpush1.xpose.msra.mxu0 0.0
        %600 = vmatprep.subr.mxu0 0.0
        %601 = vmatpush1.xpose.msra.mxu0 0.0
        %602 = vmatprep.subr.mxu0 0.0
        %603 = vmatpush1.xpose.msra.mxu0 0.0
        %604 = vmatprep.subr.mxu0 0.0
        %605 = vmatpush1.xpose.msra.mxu0 0.0
        %606 = vmatprep.subr.mxu0 0.0
        %607 = vmatpush1.xpose.msra.mxu0 0.0
        %608 = vmatprep.subr.mxu0 0.0
        %609 = vmatpush1.xpose.msra.mxu0 0.0
        %610 = vmatprep.mubr.f32.mxu0 0.0
        %611 = vmatmul.mubr.f32.gmra.mrb[0].mxu0 %v542
        %v612 = vpop.f32.mrb[0].mxu0
        %v613 = vadd.f32 0.0, %v612
        %v614 = vpop.f32.mrb[0].mxu0
        %615 = vdwg.mxu0
        %v616 = vsel %vm449, %v613, -inf
        %617 = vmax.xlane.f32.xlu0 %v616
        %v618 = vpop.xlane.xlu0 %617
        %v619 = vsub.f32 %v613, %v618
        %v620 = vmul.f32 %v619, 1.442695
        %v621 = vpow.pop %v620
        %v622 = vsel %vm449, %v621, 0.0
        %623 = vadd.xlane.f32.xlu0 %v622
        %v624 = vpop.xlane.xlu0 %623
        %625 = vrot.lane.b32.xlu0 %v368, 60
        %v626 = vpop.permute.xlu0 %625
        %v629 = vsel %vm449, %v621, 0
        %631 = vmatprep.subr.mxu0 0.0
        %632 = vmatpush1.msra.mxu0 %v626
        %633 = vmatprep.subr.mxu0 0.0
        %634 = vmatpush1.msra.mxu0 0.0
        %635 = vmatprep.subr.mxu0 0.0
        %636 = vmatpush1.msra.mxu0 0.0
        %637 = vmatprep.subr.mxu0 0.0
        %638 = vmatpush1.msra.mxu0 0.0
        %639 = vmatprep.subr.mxu0 0.0
        %640 = vmatpush1.msra.mxu0 0.0
        %641 = vmatprep.subr.mxu0 0.0
        %642 = vmatpush1.msra.mxu0 0.0
        %643 = vmatprep.subr.mxu0 0.0
        %644 = vmatpush1.msra.mxu0 0.0
        %645 = vmatprep.subr.mxu0 0.0
        %646 = vmatpush1.msra.mxu0 0.0
        %647 = vmatprep.subr.mxu0 0.0
        %648 = vmatpush1.msra.mxu0 0.0
        %649 = vmatprep.subr.mxu0 0.0
        %650 = vmatpush1.msra.mxu0 0.0
        %651 = vmatprep.subr.mxu0 0.0
        %652 = vmatpush1.msra.mxu0 0.0
        %653 = vmatprep.subr.mxu0 0.0
        %654 = vmatpush1.msra.mxu0 0.0
        %655 = vmatprep.subr.mxu0 0.0
        %656 = vmatpush1.msra.mxu0 0.0
        %657 = vmatprep.subr.mxu0 0.0
        %658 = vmatpush1.msra.mxu0 0.0
        %659 = vmatprep.subr.mxu0 0.0
        %660 = vmatpush1.msra.mxu0 0.0
        %661 = vmatprep.subr.mxu0 0.0
        %662 = vmatpush1.msra.mxu0 0.0
        %663 = vmatprep.subr.mxu0 0.0
        %664 = vmatpush1.msra.mxu0 0.0
        %665 = vmatprep.subr.mxu0 0.0
        %666 = vmatpush1.msra.mxu0 0.0
        %667 = vmatprep.subr.mxu0 0.0
        %668 = vmatpush1.msra.mxu0 0.0
        %669 = vmatprep.subr.mxu0 0.0
        %670 = vmatpush1.msra.mxu0 0.0
        %671 = vmatprep.subr.mxu0 0.0
        %672 = vmatpush1.msra.mxu0 0.0
        %673 = vmatprep.subr.mxu0 0.0
        %674 = vmatpush1.msra.mxu0 0.0
        %675 = vmatprep.subr.mxu0 0.0
        %676 = vmatpush1.msra.mxu0 0.0
        %677 = vmatprep.subr.mxu0 0.0
        %678 = vmatpush1.msra.mxu0 0.0
        %679 = vmatprep.subr.mxu0 0.0
        %680 = vmatpush1.msra.mxu0 0.0
        %681 = vmatprep.subr.mxu0 0.0
        %682 = vmatpush1.msra.mxu0 0.0
        %683 = vmatprep.subr.mxu0 0.0
        %684 = vmatpush1.msra.mxu0 0.0
        %685 = vmatprep.subr.mxu0 0.0
        %686 = vmatpush1.msra.mxu0 0.0
        %687 = vmatprep.subr.mxu0 0.0
        %688 = vmatpush1.msra.mxu0 0.0
        %689 = vmatprep.subr.mxu0 0.0
        %690 = vmatpush1.msra.mxu0 0.0
        %691 = vmatprep.subr.mxu0 0.0
        %692 = vmatpush1.msra.mxu0 0.0
        %693 = vmatprep.subr.mxu0 0.0
        %694 = vmatpush1.msra.mxu0 0.0
        %695 = vmatprep.mubr.f32.mxu0 0.0
        %696 = vmatmul.mubr.f32.gmra.mrb[0].mxu0 %v629
        %v697 = vpop.f32.mrb[0].mxu0
        %v698 = vadd.f32 0.0, %v697
        %v699 = vpop.f32.mrb[0].mxu0
        %700 = vdwg.mxu0
        %v701 = vrcp.pop %v624
        %v702 = vmul.f32 %v698, %v701
        %704 = vrot.lane.b32.xlu0 %v702, 4
        %v705 = vpop.permute.xlu0 %704
        %vm707 = vcmask 64544
        %708 = vst.msk [vmem:[#allocation2] sm:$0xff] %vm707, %v705
        %709 = vrot.lane.b32.xlu0 %v368, 120
        %v710 = vpop.permute.xlu0 %709
        %711 = vrot.lane.b32.xlu0 %v368, 88
        %v712 = vpop.permute.xlu0 %711
        %v713 = vsel %vm374, %v710, 0
        %v715 = vsel %vm374, %v712, 0
        %717 = vmatprep.subr.mxu0 0.0
        %718 = vmatpush1.xpose.msra.mxu0 %v715
        %719 = vmatprep.subr.mxu0 0.0
        %720 = vmatpush1.xpose.msra.mxu0 0.0
        %721 = vmatprep.subr.mxu0 0.0
        %722 = vmatpush1.xpose.msra.mxu0 0.0
        %723 = vmatprep.subr.mxu0 0.0
        %724 = vmatpush1.xpose.msra.mxu0 0.0
        %725 = vmatprep.subr.mxu0 0.0
        %726 = vmatpush1.xpose.msra.mxu0 0.0
        %727 = vmatprep.subr.mxu0 0.0
        %728 = vmatpush1.xpose.msra.mxu0 0.0
        %729 = vmatprep.subr.mxu0 0.0
        %730 = vmatpush1.xpose.msra.mxu0 0.0
        %731 = vmatprep.subr.mxu0 0.0
        %732 = vmatpush1.xpose.msra.mxu0 0.0
        %733 = vmatprep.subr.mxu0 0.0
        %734 = vmatpush1.xpose.msra.mxu0 0.0
        %735 = vmatprep.subr.mxu0 0.0
        %736 = vmatpush1.xpose.msra.mxu0 0.0
        %737 = vmatprep.subr.mxu0 0.0
        %738 = vmatpush1.xpose.msra.mxu0 0.0
        %739 = vmatprep.subr.mxu0 0.0
        %740 = vmatpush1.xpose.msra.mxu0 0.0
        %741 = vmatprep.subr.mxu0 0.0
        %742 = vmatpush1.xpose.msra.mxu0 0.0
        %743 = vmatprep.subr.mxu0 0.0
        %744 = vmatpush1.xpose.msra.mxu0 0.0
        %745 = vmatprep.subr.mxu0 0.0
        %746 = vmatpush1.xpose.msra.mxu0 0.0
        %747 = vmatprep.subr.mxu0 0.0
        %748 = vmatpush1.xpose.msra.mxu0 0.0
        %749 = vmatprep.subr.mxu0 0.0
        %750 = vmatpush1.xpose.msra.mxu0 0.0
        %751 = vmatprep.subr.mxu0 0.0
        %752 = vmatpush1.xpose.msra.mxu0 0.0
        %753 = vmatprep.subr.mxu0 0.0
        %754 = vmatpush1.xpose.msra.mxu0 0.0
        %755 = vmatprep.subr.mxu0 0.0
        %756 = vmatpush1.xpose.msra.mxu0 0.0
        %757 = vmatprep.subr.mxu0 0.0
        %758 = vmatpush1.xpose.msra.mxu0 0.0
        %759 = vmatprep.subr.mxu0 0.0
        %760 = vmatpush1.xpose.msra.mxu0 0.0
        %761 = vmatprep.subr.mxu0 0.0
        %762 = vmatpush1.xpose.msra.mxu0 0.0
        %763 = vmatprep.subr.mxu0 0.0
        %764 = vmatpush1.xpose.msra.mxu0 0.0
        %765 = vmatprep.subr.mxu0 0.0
        %766 = vmatpush1.xpose.msra.mxu0 0.0
        %767 = vmatprep.subr.mxu0 0.0
        %768 = vmatpush1.xpose.msra.mxu0 0.0
        %769 = vmatprep.subr.mxu0 0.0
        %770 = vmatpush1.xpose.msra.mxu0 0.0
        %771 = vmatprep.subr.mxu0 0.0
        %772 = vmatpush1.xpose.msra.mxu0 0.0
        %773 = vmatprep.subr.mxu0 0.0
        %774 = vmatpush1.xpose.msra.mxu0 0.0
        %775 = vmatprep.subr.mxu0 0.0
        %776 = vmatpush1.xpose.msra.mxu0 0.0
        %777 = vmatprep.subr.mxu0 0.0
        %778 = vmatpush1.xpose.msra.mxu0 0.0
        %779 = vmatprep.subr.mxu0 0.0
        %780 = vmatpush1.xpose.msra.mxu0 0.0
        %781 = vmatprep.mubr.f32.mxu0 0.0
        %782 = vmatmul.mubr.f32.gmra.mrb[0].mxu0 %v713
        %v783 = vpop.f32.mrb[0].mxu0
        %v784 = vadd.f32 0.0, %v783
        %v785 = vpop.f32.mrb[0].mxu0
        %786 = vdwg.mxu0
        %v787 = vsel %vm449, %v784, -inf
        %788 = vmax.xlane.f32.xlu0 %v787
        %v789 = vpop.xlane.xlu0 %788
        %v790 = vsub.f32 %v784, %v789
        %v791 = vmul.f32 %v790, 1.442695
        %v792 = vpow.pop %v791
        %v793 = vsel %vm449, %v792, 0.0
        %794 = vadd.xlane.f32.xlu0 %v793
        %v795 = vpop.xlane.xlu0 %794
        %796 = vrot.lane.b32.xlu0 %v368, 56
        %v797 = vpop.permute.xlu0 %796
        %v800 = vsel %vm449, %v792, 0
        %802 = vmatprep.subr.mxu0 0.0
        %803 = vmatpush1.msra.mxu0 %v797
        %804 = vmatprep.subr.mxu0 0.0
        %805 = vmatpush1.msra.mxu0 0.0
        %806 = vmatprep.subr.mxu0 0.0
        %807 = vmatpush1.msra.mxu0 0.0
        %808 = vmatprep.subr.mxu0 0.0
        %809 = vmatpush1.msra.mxu0 0.0
        %810 = vmatprep.subr.mxu0 0.0
        %811 = vmatpush1.msra.mxu0 0.0
        %812 = vmatprep.subr.mxu0 0.0
        %813 = vmatpush1.msra.mxu0 0.0
        %814 = vmatprep.subr.mxu0 0.0
        %815 = vmatpush1.msra.mxu0 0.0
        %816 = vmatprep.subr.mxu0 0.0
        %817 = vmatpush1.msra.mxu0 0.0
        %818 = vmatprep.subr.mxu0 0.0
        %819 = vmatpush1.msra.mxu0 0.0
        %820 = vmatprep.subr.mxu0 0.0
        %821 = vmatpush1.msra.mxu0 0.0
        %822 = vmatprep.subr.mxu0 0.0
        %823 = vmatpush1.msra.mxu0 0.0
        %824 = vmatprep.subr.mxu0 0.0
        %825 = vmatpush1.msra.mxu0 0.0
        %826 = vmatprep.subr.mxu0 0.0
        %827 = vmatpush1.msra.mxu0 0.0
        %828 = vmatprep.subr.mxu0 0.0
        %829 = vmatpush1.msra.mxu0 0.0
        %830 = vmatprep.subr.mxu0 0.0
        %831 = vmatpush1.msra.mxu0 0.0
        %832 = vmatprep.subr.mxu0 0.0
        %833 = vmatpush1.msra.mxu0 0.0
        %834 = vmatprep.subr.mxu0 0.0
        %835 = vmatpush1.msra.mxu0 0.0
        %836 = vmatprep.subr.mxu0 0.0
        %837 = vmatpush1.msra.mxu0 0.0
        %838 = vmatprep.subr.mxu0 0.0
        %839 = vmatpush1.msra.mxu0 0.0
        %840 = vmatprep.subr.mxu0 0.0
        %841 = vmatpush1.msra.mxu0 0.0
        %842 = vmatprep.subr.mxu0 0.0
        %843 = vmatpush1.msra.mxu0 0.0
        %844 = vmatprep.subr.mxu0 0.0
        %845 = vmatpush1.msra.mxu0 0.0
        %846 = vmatprep.subr.mxu0 0.0
        %847 = vmatpush1.msra.mxu0 0.0
        %848 = vmatprep.subr.mxu0 0.0
        %849 = vmatpush1.msra.mxu0 0.0
        %850 = vmatprep.subr.mxu0 0.0
        %851 = vmatpush1.msra.mxu0 0.0
        %852 = vmatprep.subr.mxu0 0.0
        %853 = vmatpush1.msra.mxu0 0.0
        %854 = vmatprep.subr.mxu0 0.0
        %855 = vmatpush1.msra.mxu0 0.0
        %856 = vmatprep.subr.mxu0 0.0
        %857 = vmatpush1.msra.mxu0 0.0
        %858 = vmatprep.subr.mxu0 0.0
        %859 = vmatpush1.msra.mxu0 0.0
        %860 = vmatprep.subr.mxu0 0.0
        %861 = vmatpush1.msra.mxu0 0.0
        %862 = vmatprep.subr.mxu0 0.0
        %863 = vmatpush1.msra.mxu0 0.0
        %864 = vmatprep.subr.mxu0 0.0
        %865 = vmatpush1.msra.mxu0 0.0
        %866 = vmatprep.mubr.f32.mxu0 0.0
        %867 = vmatmul.mubr.f32.gmra.mrb[0].mxu0 %v800
        %v868 = vpop.f32.mrb[0].mxu0
        %v869 = vadd.f32 0.0, %v868
        %v870 = vpop.f32.mrb[0].mxu0
        %871 = vdwg.mxu0
        %v872 = vrcp.pop %v795
        %v873 = vmul.f32 %v869, %v872
        %875 = vrot.lane.b32.xlu0 %v873, 8
        %v876 = vpop.permute.xlu0 %875
        %vm878 = vcmask 97344
        %879 = vst.msk [vmem:[#allocation2] sm:$0xff] %vm878, %v876
        %880 = vrot.lane.b32.xlu0 %v368, 116
        %v881 = vpop.permute.xlu0 %880
        %882 = vrot.lane.b32.xlu0 %v368, 84
        %v883 = vpop.permute.xlu0 %882
        %v884 = vsel %vm374, %v881, 0
        %v886 = vsel %vm374, %v883, 0
        %888 = vmatprep.subr.mxu0 0.0
        %889 = vmatpush1.xpose.msra.mxu0 %v886
        %890 = vmatprep.subr.mxu0 0.0
        %891 = vmatpush1.xpose.msra.mxu0 0.0
        %892 = vmatprep.subr.mxu0 0.0
        %893 = vmatpush1.xpose.msra.mxu0 0.0
        %894 = vmatprep.subr.mxu0 0.0
        %895 = vmatpush1.xpose.msra.mxu0 0.0
        %896 = vmatprep.subr.mxu0 0.0
        %897 = vmatpush1.xpose.msra.mxu0 0.0
        %898 = vmatprep.subr.mxu0 0.0
        %899 = vmatpush1.xpose.msra.mxu0 0.0
        %900 = vmatprep.subr.mxu0 0.0
        %901 = vmatpush1.xpose.msra.mxu0 0.0
        %902 = vmatprep.subr.mxu0 0.0
        %903 = vmatpush1.xpose.msra.mxu0 0.0
        %904 = vmatprep.subr.mxu0 0.0
        %905 = vmatpush1.xpose.msra.mxu0 0.0
        %906 = vmatprep.subr.mxu0 0.0
        %907 = vmatpush1.xpose.msra.mxu0 0.0
        %908 = vmatprep.subr.mxu0 0.0
        %909 = vmatpush1.xpose.msra.mxu0 0.0
        %910 = vmatprep.subr.mxu0 0.0
        %911 = vmatpush1.xpose.msra.mxu0 0.0
        %912 = vmatprep.subr.mxu0 0.0
        %913 = vmatpush1.xpose.msra.mxu0 0.0
        %914 = vmatprep.subr.mxu0 0.0
        %915 = vmatpush1.xpose.msra.mxu0 0.0
        %916 = vmatprep.subr.mxu0 0.0
        %917 = vmatpush1.xpose.msra.mxu0 0.0
        %918 = vmatprep.subr.mxu0 0.0
        %919 = vmatpush1.xpose.msra.mxu0 0.0
        %920 = vmatprep.subr.mxu0 0.0
        %921 = vmatpush1.xpose.msra.mxu0 0.0
        %922 = vmatprep.subr.mxu0 0.0
        %923 = vmatpush1.xpose.msra.mxu0 0.0
        %924 = vmatprep.subr.mxu0 0.0
        %925 = vmatpush1.xpose.msra.mxu0 0.0
        %926 = vmatprep.subr.mxu0 0.0
        %927 = vmatpush1.xpose.msra.mxu0 0.0
        %928 = vmatprep.subr.mxu0 0.0
        %929 = vmatpush1.xpose.msra.mxu0 0.0
        %930 = vmatprep.subr.mxu0 0.0
        %931 = vmatpush1.xpose.msra.mxu0 0.0
        %932 = vmatprep.subr.mxu0 0.0
        %933 = vmatpush1.xpose.msra.mxu0 0.0
        %934 = vmatprep.subr.mxu0 0.0
        %935 = vmatpush1.xpose.msra.mxu0 0.0
        %936 = vmatprep.subr.mxu0 0.0
        %937 = vmatpush1.xpose.msra.mxu0 0.0
        %938 = vmatprep.subr.mxu0 0.0
        %939 = vmatpush1.xpose.msra.mxu0 0.0
        %940 = vmatprep.subr.mxu0 0.0
        %941 = vmatpush1.xpose.msra.mxu0 0.0
        %942 = vmatprep.subr.mxu0 0.0
        %943 = vmatpush1.xpose.msra.mxu0 0.0
        %944 = vmatprep.subr.mxu0 0.0
        %945 = vmatpush1.xpose.msra.mxu0 0.0
        %946 = vmatprep.subr.mxu0 0.0
        %947 = vmatpush1.xpose.msra.mxu0 0.0
        %948 = vmatprep.subr.mxu0 0.0
        %949 = vmatpush1.xpose.msra.mxu0 0.0
        %950 = vmatprep.subr.mxu0 0.0
        %951 = vmatpush1.xpose.msra.mxu0 0.0
        %952 = vmatprep.mubr.f32.mxu0 0.0
        %953 = vmatmul.mubr.f32.gmra.mrb[0].mxu0 %v884
        %v954 = vpop.f32.mrb[0].mxu0
        %v955 = vadd.f32 0.0, %v954
        %v956 = vpop.f32.mrb[0].mxu0
        %957 = vdwg.mxu0
        %v958 = vsel %vm449, %v955, -inf
        %959 = vmax.xlane.f32.xlu0 %v958
        %v960 = vpop.xlane.xlu0 %959
        %v961 = vsub.f32 %v955, %v960
        %v962 = vmul.f32 %v961, 1.442695
        %v963 = vpow.pop %v962
        %v964 = vsel %vm449, %v963, 0.0
        %965 = vadd.xlane.f32.xlu0 %v964
        %v966 = vpop.xlane.xlu0 %965
        %967 = vrot.lane.b32.xlu0 %v368, 52
        %v968 = vpop.permute.xlu0 %967
        %v971 = vsel %vm449, %v963, 0
        %973 = vmatprep.subr.mxu0 0.0
        %974 = vmatpush1.msra.mxu0 %v968
        %975 = vmatprep.subr.mxu0 0.0
        %976 = vmatpush1.msra.mxu0 0.0
        %977 = vmatprep.subr.mxu0 0.0
        %978 = vmatpush1.msra.mxu0 0.0
        %979 = vmatprep.subr.mxu0 0.0
        %980 = vmatpush1.msra.mxu0 0.0
        %981 = vmatprep.subr.mxu0 0.0
        %982 = vmatpush1.msra.mxu0 0.0
        %983 = vmatprep.subr.mxu0 0.0
        %984 = vmatpush1.msra.mxu0 0.0
        %985 = vmatprep.subr.mxu0 0.0
        %986 = vmatpush1.msra.mxu0 0.0
        %987 = vmatprep.subr.mxu0 0.0
        %988 = vmatpush1.msra.mxu0 0.0
        %989 = vmatprep.subr.mxu0 0.0
        %990 = vmatpush1.msra.mxu0 0.0
        %991 = vmatprep.subr.mxu0 0.0
        %992 = vmatpush1.msra.mxu0 0.0
        %993 = vmatprep.subr.mxu0 0.0
        %994 = vmatpush1.msra.mxu0 0.0
        %995 = vmatprep.subr.mxu0 0.0
        %996 = vmatpush1.msra.mxu0 0.0
        %997 = vmatprep.subr.mxu0 0.0
        %998 = vmatpush1.msra.mxu0 0.0
        %999 = vmatprep.subr.mxu0 0.0
        %1000 = vmatpush1.msra.mxu0 0.0
        %1001 = vmatprep.subr.mxu0 0.0
        %1002 = vmatpush1.msra.mxu0 0.0
        %1003 = vmatprep.subr.mxu0 0.0
        %1004 = vmatpush1.msra.mxu0 0.0
        %1005 = vmatprep.subr.mxu0 0.0
        %1006 = vmatpush1.msra.mxu0 0.0
        %1007 = vmatprep.subr.mxu0 0.0
        %1008 = vmatpush1.msra.mxu0 0.0
        %1009 = vmatprep.subr.mxu0 0.0
        %1010 = vmatpush1.msra.mxu0 0.0
        %1011 = vmatprep.subr.mxu0 0.0
        %1012 = vmatpush1.msra.mxu0 0.0
        %1013 = vmatprep.subr.mxu0 0.0
        %1014 = vmatpush1.msra.mxu0 0.0
        %1015 = vmatprep.subr.mxu0 0.0
        %1016 = vmatpush1.msra.mxu0 0.0
        %1017 = vmatprep.subr.mxu0 0.0
        %1018 = vmatpush1.msra.mxu0 0.0
        %1019 = vmatprep.subr.mxu0 0.0
        %1020 = vmatpush1.msra.mxu0 0.0
        %1021 = vmatprep.subr.mxu0 0.0
        %1022 = vmatpush1.msra.mxu0 0.0
        %1023 = vmatprep.subr.mxu0 0.0
        %1024 = vmatpush1.msra.mxu0 0.0
        %1025 = vmatprep.subr.mxu0 0.0
        %1026 = vmatpush1.msra.mxu0 0.0
        %1027 = vmatprep.subr.mxu0 0.0
        %1028 = vmatpush1.msra.mxu0 0.0
        %1029 = vmatprep.subr.mxu0 0.0
        %1030 = vmatpush1.msra.mxu0 0.0
        %1031 = vmatprep.subr.mxu0 0.0
        %1032 = vmatpush1.msra.mxu0 0.0
        %1033 = vmatprep.subr.mxu0 0.0
        %1034 = vmatpush1.msra.mxu0 0.0
        %1035 = vmatprep.subr.mxu0 0.0
        %1036 = vmatpush1.msra.mxu0 0.0
        %1037 = vmatprep.mubr.f32.mxu0 0.0
        %1038 = vmatmul.mubr.f32.gmra.mrb[0].mxu0 %v971
        %v1039 = vpop.f32.mrb[0].mxu0
        %v1040 = vadd.f32 0.0, %v1039
        %v1041 = vpop.f32.mrb[0].mxu0
        %1042 = vdwg.mxu0
        %v1043 = vrcp.pop %v966
        %v1044 = vmul.f32 %v1040, %v1043
        %1046 = vrot.lane.b32.xlu0 %v1044, 12
        %v1047 = vpop.permute.xlu0 %1046
        %vm1049 = vcmask 130144
        %1050 = vst.msk [vmem:[#allocation2] sm:$0xff] %vm1049, %v1047
        %1051 = vrot.lane.b32.xlu0 %v368, 112
        %v1052 = vpop.permute.xlu0 %1051
        %1053 = vrot.lane.b32.xlu0 %v368, 80
        %v1054 = vpop.permute.xlu0 %1053
        %v1055 = vsel %vm374, %v1052, 0
        %v1057 = vsel %vm374, %v1054, 0
        %1059 = vmatprep.subr.mxu0 0.0
        %1060 = vmatpush1.xpose.msra.mxu0 %v1057
        %1061 = vmatprep.subr.mxu0 0.0
        %1062 = vmatpush1.xpose.msra.mxu0 0.0
        %1063 = vmatprep.subr.mxu0 0.0
        %1064 = vmatpush1.xpose.msra.mxu0 0.0
        %1065 = vmatprep.subr.mxu0 0.0
        %1066 = vmatpush1.xpose.msra.mxu0 0.0
        %1067 = vmatprep.subr.mxu0 0.0
        %1068 = vmatpush1.xpose.msra.mxu0 0.0
        %1069 = vmatprep.subr.mxu0 0.0
        %1070 = vmatpush1.xpose.msra.mxu0 0.0
        %1071 = vmatprep.subr.mxu0 0.0
        %1072 = vmatpush1.xpose.msra.mxu0 0.0
        %1073 = vmatprep.subr.mxu0 0.0
        %1074 = vmatpush1.xpose.msra.mxu0 0.0
        %1075 = vmatprep.subr.mxu0 0.0
        %1076 = vmatpush1.xpose.msra.mxu0 0.0
        %1077 = vmatprep.subr.mxu0 0.0
        %1078 = vmatpush1.xpose.msra.mxu0 0.0
        %1079 = vmatprep.subr.mxu0 0.0
        %1080 = vmatpush1.xpose.msra.mxu0 0.0
        %1081 = vmatprep.subr.mxu0 0.0
        %1082 = vmatpush1.xpose.msra.mxu0 0.0
        %1083 = vmatprep.subr.mxu0 0.0
        %1084 = vmatpush1.xpose.msra.mxu0 0.0
        %1085 = vmatprep.subr.mxu0 0.0
        %1086 = vmatpush1.xpose.msra.mxu0 0.0
        %1087 = vmatprep.subr.mxu0 0.0
        %1088 = vmatpush1.xpose.msra.mxu0 0.0
        %1089 = vmatprep.subr.mxu0 0.0
        %1090 = vmatpush1.xpose.msra.mxu0 0.0
        %1091 = vmatprep.subr.mxu0 0.0
        %1092 = vmatpush1.xpose.msra.mxu0 0.0
        %1093 = vmatprep.subr.mxu0 0.0
        %1094 = vmatpush1.xpose.msra.mxu0 0.0
        %1095 = vmatprep.subr.mxu0 0.0
        %1096 = vmatpush1.xpose.msra.mxu0 0.0
        %1097 = vmatprep.subr.mxu0 0.0
        %1098 = vmatpush1.xpose.msra.mxu0 0.0
        %1099 = vmatprep.subr.mxu0 0.0
        %1100 = vmatpush1.xpose.msra.mxu0 0.0
        %1101 = vmatprep.subr.mxu0 0.0
        %1102 = vmatpush1.xpose.msra.mxu0 0.0
        %1103 = vmatprep.subr.mxu0 0.0
        %1104 = vmatpush1.xpose.msra.mxu0 0.0
        %1105 = vmatprep.subr.mxu0 0.0
        %1106 = vmatpush1.xpose.msra.mxu0 0.0
        %1107 = vmatprep.subr.mxu0 0.0
        %1108 = vmatpush1.xpose.msra.mxu0 0.0
        %1109 = vmatprep.subr.mxu0 0.0
        %1110 = vmatpush1.xpose.msra.mxu0 0.0
        %1111 = vmatprep.subr.mxu0 0.0
        %1112 = vmatpush1.xpose.msra.mxu0 0.0
        %1113 = vmatprep.subr.mxu0 0.0
        %1114 = vmatpush1.xpose.msra.mxu0 0.0
        %1115 = vmatprep.subr.mxu0 0.0
        %1116 = vmatpush1.xpose.msra.mxu0 0.0
        %1117 = vmatprep.subr.mxu0 0.0
        %1118 = vmatpush1.xpose.msra.mxu0 0.0
        %1119 = vmatprep.subr.mxu0 0.0
        %1120 = vmatpush1.xpose.msra.mxu0 0.0
        %1121 = vmatprep.subr.mxu0 0.0
        %1122 = vmatpush1.xpose.msra.mxu0 0.0
        %1123 = vmatprep.mubr.f32.mxu0 0.0
        %1124 = vmatmul.mubr.f32.gmra.mrb[0].mxu0 %v1055
        %v1125 = vpop.f32.mrb[0].mxu0
        %v1126 = vadd.f32 0.0, %v1125
        %v1127 = vpop.f32.mrb[0].mxu0
        %1128 = vdwg.mxu0
        %v1129 = vsel %vm449, %v1126, -inf
        %1130 = vmax.xlane.f32.xlu0 %v1129
        %v1131 = vpop.xlane.xlu0 %1130
        %v1132 = vsub.f32 %v1126, %v1131
        %v1133 = vmul.f32 %v1132, 1.442695
        %v1134 = vpow.pop %v1133
        %v1135 = vsel %vm449, %v1134, 0.0
        %1136 = vadd.xlane.f32.xlu0 %v1135
        %v1137 = vpop.xlane.xlu0 %1136
        %1138 = vrot.lane.b32.xlu0 %v368, 48
        %v1139 = vpop.permute.xlu0 %1138
        %v1142 = vsel %vm449, %v1134, 0
        %1144 = vmatprep.subr.mxu0 0.0
        %1145 = vmatpush1.msra.mxu0 %v1139
        %1146 = vmatprep.subr.mxu0 0.0
        %1147 = vmatpush1.msra.mxu0 0.0
        %1148 = vmatprep.subr.mxu0 0.0
        %1149 = vmatpush1.msra.mxu0 0.0
        %1150 = vmatprep.subr.mxu0 0.0
        %1151 = vmatpush1.msra.mxu0 0.0
        %1152 = vmatprep.subr.mxu0 0.0
        %1153 = vmatpush1.msra.mxu0 0.0
        %1154 = vmatprep.subr.mxu0 0.0
        %1155 = vmatpush1.msra.mxu0 0.0
        %1156 = vmatprep.subr.mxu0 0.0
        %1157 = vmatpush1.msra.mxu0 0.0
        %1158 = vmatprep.subr.mxu0 0.0
        %1159 = vmatpush1.msra.mxu0 0.0
        %1160 = vmatprep.subr.mxu0 0.0
        %1161 = vmatpush1.msra.mxu0 0.0
        %1162 = vmatprep.subr.mxu0 0.0
        %1163 = vmatpush1.msra.mxu0 0.0
        %1164 = vmatprep.subr.mxu0 0.0
        %1165 = vmatpush1.msra.mxu0 0.0
        %1166 = vmatprep.subr.mxu0 0.0
        %1167 = vmatpush1.msra.mxu0 0.0
        %1168 = vmatprep.subr.mxu0 0.0
        %1169 = vmatpush1.msra.mxu0 0.0
        %1170 = vmatprep.subr.mxu0 0.0
        %1171 = vmatpush1.msra.mxu0 0.0
        %1172 = vmatprep.subr.mxu0 0.0
        %1173 = vmatpush1.msra.mxu0 0.0
        %1174 = vmatprep.subr.mxu0 0.0
        %1175 = vmatpush1.msra.mxu0 0.0
        %1176 = vmatprep.subr.mxu0 0.0
        %1177 = vmatpush1.msra.mxu0 0.0
        %1178 = vmatprep.subr.mxu0 0.0
        %1179 = vmatpush1.msra.mxu0 0.0
        %1180 = vmatprep.subr.mxu0 0.0
        %1181 = vmatpush1.msra.mxu0 0.0
        %1182 = vmatprep.subr.mxu0 0.0
        %1183 = vmatpush1.msra.mxu0 0.0
        %1184 = vmatprep.subr.mxu0 0.0
        %1185 = vmatpush1.msra.mxu0 0.0
        %1186 = vmatprep.subr.mxu0 0.0
        %1187 = vmatpush1.msra.mxu0 0.0
        %1188 = vmatprep.subr.mxu0 0.0
        %1189 = vmatpush1.msra.mxu0 0.0
        %1190 = vmatprep.subr.mxu0 0.0
        %1191 = vmatpush1.msra.mxu0 0.0
        %1192 = vmatprep.subr.mxu0 0.0
        %1193 = vmatpush1.msra.mxu0 0.0
        %1194 = vmatprep.subr.mxu0 0.0
        %1195 = vmatpush1.msra.mxu0 0.0
        %1196 = vmatprep.subr.mxu0 0.0
        %1197 = vmatpush1.msra.mxu0 0.0
        %1198 = vmatprep.subr.mxu0 0.0
        %1199 = vmatpush1.msra.mxu0 0.0
        %1200 = vmatprep.subr.mxu0 0.0
        %1201 = vmatpush1.msra.mxu0 0.0
        %1202 = vmatprep.subr.mxu0 0.0
        %1203 = vmatpush1.msra.mxu0 0.0
        %1204 = vmatprep.subr.mxu0 0.0
        %1205 = vmatpush1.msra.mxu0 0.0
        %1206 = vmatprep.subr.mxu0 0.0
        %1207 = vmatpush1.msra.mxu0 0.0
        %1208 = vmatprep.mubr.f32.mxu0 0.0
        %1209 = vmatmul.mubr.f32.gmra.mrb[0].mxu0 %v1142
        %v1210 = vpop.f32.mrb[0].mxu0
        %v1211 = vadd.f32 0.0, %v1210
        %v1212 = vpop.f32.mrb[0].mxu0
        %1213 = vdwg.mxu0
        %v1214 = vrcp.pop %v1137
        %v1215 = vmul.f32 %v1211, %v1214
        %1217 = vrot.lane.b32.xlu0 %v1215, 16
        %v1218 = vpop.permute.xlu0 %1217
        %vm1220 = vcmask 162944
        %1221 = vst.msk [vmem:[#allocation2] sm:$0xff] %vm1220, %v1218
        %1222 = vrot.lane.b32.xlu0 %v368, 108
        %v1223 = vpop.permute.xlu0 %1222
        %1224 = vrot.lane.b32.xlu0 %v368, 76
        %v1225 = vpop.permute.xlu0 %1224
        %v1226 = vsel %vm374, %v1223, 0
        %v1228 = vsel %vm374, %v1225, 0
        %1230 = vmatprep.subr.mxu0 0.0
        %1231 = vmatpush1.xpose.msra.mxu0 %v1228
        %1232 = vmatprep.subr.mxu0 0.0
        %1233 = vmatpush1.xpose.msra.mxu0 0.0
        %1234 = vmatprep.subr.mxu0 0.0
        %1235 = vmatpush1.xpose.msra.mxu0 0.0
        %1236 = vmatprep.subr.mxu0 0.0
        %1237 = vmatpush1.xpose.msra.mxu0 0.0
        %1238 = vmatprep.subr.mxu0 0.0
        %1239 = vmatpush1.xpose.msra.mxu0 0.0
        %1240 = vmatprep.subr.mxu0 0.0
        %1241 = vmatpush1.xpose.msra.mxu0 0.0
        %1242 = vmatprep.subr.mxu0 0.0
        %1243 = vmatpush1.xpose.msra.mxu0 0.0
        %1244 = vmatprep.subr.mxu0 0.0
        %1245 = vmatpush1.xpose.msra.mxu0 0.0
        %1246 = vmatprep.subr.mxu0 0.0
        %1247 = vmatpush1.xpose.msra.mxu0 0.0
        %1248 = vmatprep.subr.mxu0 0.0
        %1249 = vmatpush1.xpose.msra.mxu0 0.0
        %1250 = vmatprep.subr.mxu0 0.0
        %1251 = vmatpush1.xpose.msra.mxu0 0.0
        %1252 = vmatprep.subr.mxu0 0.0
        %1253 = vmatpush1.xpose.msra.mxu0 0.0
        %1254 = vmatprep.subr.mxu0 0.0
        %1255 = vmatpush1.xpose.msra.mxu0 0.0
        %1256 = vmatprep.subr.mxu0 0.0
        %1257 = vmatpush1.xpose.msra.mxu0 0.0
        %1258 = vmatprep.subr.mxu0 0.0
        %1259 = vmatpush1.xpose.msra.mxu0 0.0
        %1260 = vmatprep.subr.mxu0 0.0
        %1261 = vmatpush1.xpose.msra.mxu0 0.0
        %1262 = vmatprep.subr.mxu0 0.0
        %1263 = vmatpush1.xpose.msra.mxu0 0.0
        %1264 = vmatprep.subr.mxu0 0.0
        %1265 = vmatpush1.xpose.msra.mxu0 0.0
        %1266 = vmatprep.subr.mxu0 0.0
        %1267 = vmatpush1.xpose.msra.mxu0 0.0
        %1268 = vmatprep.subr.mxu0 0.0
        %1269 = vmatpush1.xpose.msra.mxu0 0.0
        %1270 = vmatprep.subr.mxu0 0.0
        %1271 = vmatpush1.xpose.msra.mxu0 0.0
        %1272 = vmatprep.subr.mxu0 0.0
        %1273 = vmatpush1.xpose.msra.mxu0 0.0
        %1274 = vmatprep.subr.mxu0 0.0
        %1275 = vmatpush1.xpose.msra.mxu0 0.0
        %1276 = vmatprep.subr.mxu0 0.0
        %1277 = vmatpush1.xpose.msra.mxu0 0.0
        %1278 = vmatprep.subr.mxu0 0.0
        %1279 = vmatpush1.xpose.msra.mxu0 0.0
        %1280 = vmatprep.subr.mxu0 0.0
        %1281 = vmatpush1.xpose.msra.mxu0 0.0
        %1282 = vmatprep.subr.mxu0 0.0
        %1283 = vmatpush1.xpose.msra.mxu0 0.0
        %1284 = vmatprep.subr.mxu0 0.0
        %1285 = vmatpush1.xpose.msra.mxu0 0.0
        %1286 = vmatprep.subr.mxu0 0.0
        %1287 = vmatpush1.xpose.msra.mxu0 0.0
        %1288 = vmatprep.subr.mxu0 0.0
        %1289 = vmatpush1.xpose.msra.mxu0 0.0
        %1290 = vmatprep.subr.mxu0 0.0
        %1291 = vmatpush1.xpose.msra.mxu0 0.0
        %1292 = vmatprep.subr.mxu0 0.0
        %1293 = vmatpush1.xpose.msra.mxu0 0.0
        %1294 = vmatprep.mubr.f32.mxu0 0.0
        %1295 = vmatmul.mubr.f32.gmra.mrb[0].mxu0 %v1226
        %v1296 = vpop.f32.mrb[0].mxu0
        %v1297 = vadd.f32 0.0, %v1296
        %v1298 = vpop.f32.mrb[0].mxu0
        %1299 = vdwg.mxu0
        %v1300 = vsel %vm449, %v1297, -inf
        %1301 = vmax.xlane.f32.xlu0 %v1300
        %v1302 = vpop.xlane.xlu0 %1301
        %v1303 = vsub.f32 %v1297, %v1302
        %v1304 = vmul.f32 %v1303, 1.442695
        %v1305 = vpow.pop %v1304
        %v1306 = vsel %vm449, %v1305, 0.0
        %1307 = vadd.xlane.f32.xlu0 %v1306
        %v1308 = vpop.xlane.xlu0 %1307
        %1309 = vrot.lane.b32.xlu0 %v368, 44
        %v1310 = vpop.permute.xlu0 %1309
        %v1313 = vsel %vm449, %v1305, 0
        %1315 = vmatprep.subr.mxu0 0.0
        %1316 = vmatpush1.msra.mxu0 %v1310
        %1317 = vmatprep.subr.mxu0 0.0
        %1318 = vmatpush1.msra.mxu0 0.0
        %1319 = vmatprep.subr.mxu0 0.0
        %1320 = vmatpush1.msra.mxu0 0.0
        %1321 = vmatprep.subr.mxu0 0.0
        %1322 = vmatpush1.msra.mxu0 0.0
        %1323 = vmatprep.subr.mxu0 0.0
        %1324 = vmatpush1.msra.mxu0 0.0
        %1325 = vmatprep.subr.mxu0 0.0
        %1326 = vmatpush1.msra.mxu0 0.0
        %1327 = vmatprep.subr.mxu0 0.0
        %1328 = vmatpush1.msra.mxu0 0.0
        %1329 = vmatprep.subr.mxu0 0.0
        %1330 = vmatpush1.msra.mxu0 0.0
        %1331 = vmatprep.subr.mxu0 0.0
        %1332 = vmatpush1.msra.mxu0 0.0
        %1333 = vmatprep.subr.mxu0 0.0
        %1334 = vmatpush1.msra.mxu0 0.0
        %1335 = vmatprep.subr.mxu0 0.0
        %1336 = vmatpush1.msra.mxu0 0.0
        %1337 = vmatprep.subr.mxu0 0.0
        %1338 = vmatpush1.msra.mxu0 0.0
        %1339 = vmatprep.subr.mxu0 0.0
        %1340 = vmatpush1.msra.mxu0 0.0
        %1341 = vmatprep.subr.mxu0 0.0
        %1342 = vmatpush1.msra.mxu0 0.0
        %1343 = vmatprep.subr.mxu0 0.0
        %1344 = vmatpush1.msra.mxu0 0.0
        %1345 = vmatprep.subr.mxu0 0.0
        %1346 = vmatpush1.msra.mxu0 0.0
        %1347 = vmatprep.subr.mxu0 0.0
        %1348 = vmatpush1.msra.mxu0 0.0
        %1349 = vmatprep.subr.mxu0 0.0
        %1350 = vmatpush1.msra.mxu0 0.0
        %1351 = vmatprep.subr.mxu0 0.0
        %1352 = vmatpush1.msra.mxu0 0.0
        %1353 = vmatprep.subr.mxu0 0.0
        %1354 = vmatpush1.msra.mxu0 0.0
        %1355 = vmatprep.subr.mxu0 0.0
        %1356 = vmatpush1.msra.mxu0 0.0
        %1357 = vmatprep.subr.mxu0 0.0
        %1358 = vmatpush1.msra.mxu0 0.0
        %1359 = vmatprep.subr.mxu0 0.0
        %1360 = vmatpush1.msra.mxu0 0.0
        %1361 = vmatprep.subr.mxu0 0.0
        %1362 = vmatpush1.msra.mxu0 0.0
        %1363 = vmatprep.subr.mxu0 0.0
        %1364 = vmatpush1.msra.mxu0 0.0
        %1365 = vmatprep.subr.mxu0 0.0
        %1366 = vmatpush1.msra.mxu0 0.0
        %1367 = vmatprep.subr.mxu0 0.0
        %1368 = vmatpush1.msra.mxu0 0.0
        %1369 = vmatprep.subr.mxu0 0.0
        %1370 = vmatpush1.msra.mxu0 0.0
        %1371 = vmatprep.subr.mxu0 0.0
        %1372 = vmatpush1.msra.mxu0 0.0
        %1373 = vmatprep.subr.mxu0 0.0
        %1374 = vmatpush1.msra.mxu0 0.0
        %1375 = vmatprep.subr.mxu0 0.0
        %1376 = vmatpush1.msra.mxu0 0.0
        %1377 = vmatprep.subr.mxu0 0.0
        %1378 = vmatpush1.msra.mxu0 0.0
        %1379 = vmatprep.mubr.f32.mxu0 0.0
        %1380 = vmatmul.mubr.f32.gmra.mrb[0].mxu0 %v1313
        %v1381 = vpop.f32.mrb[0].mxu0
        %v1382 = vadd.f32 0.0, %v1381
        %v1383 = vpop.f32.mrb[0].mxu0
        %1384 = vdwg.mxu0
        %v1385 = vrcp.pop %v1308
        %v1386 = vmul.f32 %v1382, %v1385
        %1388 = vrot.lane.b32.xlu0 %v1386, 20
        %v1389 = vpop.permute.xlu0 %1388
        %vm1391 = vcmask 195744
        %1392 = vst.msk [vmem:[#allocation2] sm:$0xff] %vm1391, %v1389
        %1393 = vrot.lane.b32.xlu0 %v368, 104
        %v1394 = vpop.permute.xlu0 %1393
        %1395 = vrot.lane.b32.xlu0 %v368, 72
        %v1396 = vpop.permute.xlu0 %1395
        %v1397 = vsel %vm374, %v1394, 0
        %v1399 = vsel %vm374, %v1396, 0
        %1401 = vmatprep.subr.mxu0 0.0
        %1402 = vmatpush1.xpose.msra.mxu0 %v1399
        %1403 = vmatprep.subr.mxu0 0.0
        %1404 = vmatpush1.xpose.msra.mxu0 0.0
        %1405 = vmatprep.subr.mxu0 0.0
        %1406 = vmatpush1.xpose.msra.mxu0 0.0
        %1407 = vmatprep.subr.mxu0 0.0
        %1408 = vmatpush1.xpose.msra.mxu0 0.0
        %1409 = vmatprep.subr.mxu0 0.0
        %1410 = vmatpush1.xpose.msra.mxu0 0.0
        %1411 = vmatprep.subr.mxu0 0.0
        %1412 = vmatpush1.xpose.msra.mxu0 0.0
        %1413 = vmatprep.subr.mxu0 0.0
        %1414 = vmatpush1.xpose.msra.mxu0 0.0
        %1415 = vmatprep.subr.mxu0 0.0
        %1416 = vmatpush1.xpose.msra.mxu0 0.0
        %1417 = vmatprep.subr.mxu0 0.0
        %1418 = vmatpush1.xpose.msra.mxu0 0.0
        %1419 = vmatprep.subr.mxu0 0.0
        %1420 = vmatpush1.xpose.msra.mxu0 0.0
        %1421 = vmatprep.subr.mxu0 0.0
        %1422 = vmatpush1.xpose.msra.mxu0 0.0
        %1423 = vmatprep.subr.mxu0 0.0
        %1424 = vmatpush1.xpose.msra.mxu0 0.0
        %1425 = vmatprep.subr.mxu0 0.0
        %1426 = vmatpush1.xpose.msra.mxu0 0.0
        %1427 = vmatprep.subr.mxu0 0.0
        %1428 = vmatpush1.xpose.msra.mxu0 0.0
        %1429 = vmatprep.subr.mxu0 0.0
        %1430 = vmatpush1.xpose.msra.mxu0 0.0
        %1431 = vmatprep.subr.mxu0 0.0
        %1432 = vmatpush1.xpose.msra.mxu0 0.0
        %1433 = vmatprep.subr.mxu0 0.0
        %1434 = vmatpush1.xpose.msra.mxu0 0.0
        %1435 = vmatprep.subr.mxu0 0.0
        %1436 = vmatpush1.xpose.msra.mxu0 0.0
        %1437 = vmatprep.subr.mxu0 0.0
        %1438 = vmatpush1.xpose.msra.mxu0 0.0
        %1439 = vmatprep.subr.mxu0 0.0
        %1440 = vmatpush1.xpose.msra.mxu0 0.0
        %1441 = vmatprep.subr.mxu0 0.0
        %1442 = vmatpush1.xpose.msra.mxu0 0.0
        %1443 = vmatprep.subr.mxu0 0.0
        %1444 = vmatpush1.xpose.msra.mxu0 0.0
        %1445 = vmatprep.subr.mxu0 0.0
        %1446 = vmatpush1.xpose.msra.mxu0 0.0
        %1447 = vmatprep.subr.mxu0 0.0
        %1448 = vmatpush1.xpose.msra.mxu0 0.0
        %1449 = vmatprep.subr.mxu0 0.0
        %1450 = vmatpush1.xpose.msra.mxu0 0.0
        %1451 = vmatprep.subr.mxu0 0.0
        %1452 = vmatpush1.xpose.msra.mxu0 0.0
        %1453 = vmatprep.subr.mxu0 0.0
        %1454 = vmatpush1.xpose.msra.mxu0 0.0
        %1455 = vmatprep.subr.mxu0 0.0
        %1456 = vmatpush1.xpose.msra.mxu0 0.0
        %1457 = vmatprep.subr.mxu0 0.0
        %1458 = vmatpush1.xpose.msra.mxu0 0.0
        %1459 = vmatprep.subr.mxu0 0.0
        %1460 = vmatpush1.xpose.msra.mxu0 0.0
        %1461 = vmatprep.subr.mxu0 0.0
        %1462 = vmatpush1.xpose.msra.mxu0 0.0
        %1463 = vmatprep.subr.mxu0 0.0
        %1464 = vmatpush1.xpose.msra.mxu0 0.0
        %1465 = vmatprep.mubr.f32.mxu0 0.0
        %1466 = vmatmul.mubr.f32.gmra.mrb[0].mxu0 %v1397
        %v1467 = vpop.f32.mrb[0].mxu0
        %v1468 = vadd.f32 0.0, %v1467
        %v1469 = vpop.f32.mrb[0].mxu0
        %1470 = vdwg.mxu0
        %v1471 = vsel %vm449, %v1468, -inf
        %1472 = vmax.xlane.f32.xlu0 %v1471
        %v1473 = vpop.xlane.xlu0 %1472
        %v1474 = vsub.f32 %v1468, %v1473
        %v1475 = vmul.f32 %v1474, 1.442695
        %v1476 = vpow.pop %v1475
        %v1477 = vsel %vm449, %v1476, 0.0
        %1478 = vadd.xlane.f32.xlu0 %v1477
        %v1479 = vpop.xlane.xlu0 %1478
        %1480 = vrot.lane.b32.xlu0 %v368, 40
        %v1481 = vpop.permute.xlu0 %1480
        %v1484 = vsel %vm449, %v1476, 0
        %1486 = vmatprep.subr.mxu0 0.0
        %1487 = vmatpush1.msra.mxu0 %v1481
        %1488 = vmatprep.subr.mxu0 0.0
        %1489 = vmatpush1.msra.mxu0 0.0
        %1490 = vmatprep.subr.mxu0 0.0
        %1491 = vmatpush1.msra.mxu0 0.0
        %1492 = vmatprep.subr.mxu0 0.0
        %1493 = vmatpush1.msra.mxu0 0.0
        %1494 = vmatprep.subr.mxu0 0.0
        %1495 = vmatpush1.msra.mxu0 0.0
        %1496 = vmatprep.subr.mxu0 0.0
        %1497 = vmatpush1.msra.mxu0 0.0
        %1498 = vmatprep.subr.mxu0 0.0
        %1499 = vmatpush1.msra.mxu0 0.0
        %1500 = vmatprep.subr.mxu0 0.0
        %1501 = vmatpush1.msra.mxu0 0.0
        %1502 = vmatprep.subr.mxu0 0.0
        %1503 = vmatpush1.msra.mxu0 0.0
        %1504 = vmatprep.subr.mxu0 0.0
        %1505 = vmatpush1.msra.mxu0 0.0
        %1506 = vmatprep.subr.mxu0 0.0
        %1507 = vmatpush1.msra.mxu0 0.0
        %1508 = vmatprep.subr.mxu0 0.0
        %1509 = vmatpush1.msra.mxu0 0.0
        %1510 = vmatprep.subr.mxu0 0.0
        %1511 = vmatpush1.msra.mxu0 0.0
        %1512 = vmatprep.subr.mxu0 0.0
        %1513 = vmatpush1.msra.mxu0 0.0
        %1514 = vmatprep.subr.mxu0 0.0
        %1515 = vmatpush1.msra.mxu0 0.0
        %1516 = vmatprep.subr.mxu0 0.0
        %1517 = vmatpush1.msra.mxu0 0.0
        %1518 = vmatprep.subr.mxu0 0.0
        %1519 = vmatpush1.msra.mxu0 0.0
        %1520 = vmatprep.subr.mxu0 0.0
        %1521 = vmatpush1.msra.mxu0 0.0
        %1522 = vmatprep.subr.mxu0 0.0
        %1523 = vmatpush1.msra.mxu0 0.0
        %1524 = vmatprep.subr.mxu0 0.0
        %1525 = vmatpush1.msra.mxu0 0.0
        %1526 = vmatprep.subr.mxu0 0.0
        %1527 = vmatpush1.msra.mxu0 0.0
        %1528 = vmatprep.subr.mxu0 0.0
        %1529 = vmatpush1.msra.mxu0 0.0
        %1530 = vmatprep.subr.mxu0 0.0
        %1531 = vmatpush1.msra.mxu0 0.0
        %1532 = vmatprep.subr.mxu0 0.0
        %1533 = vmatpush1.msra.mxu0 0.0
        %1534 = vmatprep.subr.mxu0 0.0
        %1535 = vmatpush1.msra.mxu0 0.0
        %1536 = vmatprep.subr.mxu0 0.0
        %1537 = vmatpush1.msra.mxu0 0.0
        %1538 = vmatprep.subr.mxu0 0.0
        %1539 = vmatpush1.msra.mxu0 0.0
        %1540 = vmatprep.subr.mxu0 0.0
        %1541 = vmatpush1.msra.mxu0 0.0
        %1542 = vmatprep.subr.mxu0 0.0
        %1543 = vmatpush1.msra.mxu0 0.0
        %1544 = vmatprep.subr.mxu0 0.0
        %1545 = vmatpush1.msra.mxu0 0.0
        %1546 = vmatprep.subr.mxu0 0.0
        %1547 = vmatpush1.msra.mxu0 0.0
        %1548 = vmatprep.subr.mxu0 0.0
        %1549 = vmatpush1.msra.mxu0 0.0
        %1550 = vmatprep.mubr.f32.mxu0 0.0
        %1551 = vmatmul.mubr.f32.gmra.mrb[0].mxu0 %v1484
        %v1552 = vpop.f32.mrb[0].mxu0
        %v1553 = vadd.f32 0.0, %v1552
        %v1554 = vpop.f32.mrb[0].mxu0
        %1555 = vdwg.mxu0
        %v1556 = vrcp.pop %v1479
        %v1557 = vmul.f32 %v1553, %v1556
        %1559 = vrot.lane.b32.xlu0 %v1557, 24
        %v1560 = vpop.permute.xlu0 %1559
        %vm1562 = vcmask 228544
        %1563 = vst.msk [vmem:[#allocation2] sm:$0xff] %vm1562, %v1560
        %1564 = vrot.lane.b32.xlu0 %v368, 100
        %v1565 = vpop.permute.xlu0 %1564
        %1566 = vrot.lane.b32.xlu0 %v368, 68
        %v1567 = vpop.permute.xlu0 %1566
        %v1568 = vsel %vm374, %v1565, 0
        %v1570 = vsel %vm374, %v1567, 0
        %1572 = vmatprep.subr.mxu0 0.0
        %1573 = vmatpush1.xpose.msra.mxu0 %v1570
        %1574 = vmatprep.subr.mxu0 0.0
        %1575 = vmatpush1.xpose.msra.mxu0 0.0
        %1576 = vmatprep.subr.mxu0 0.0
        %1577 = vmatpush1.xpose.msra.mxu0 0.0
        %1578 = vmatprep.subr.mxu0 0.0
        %1579 = vmatpush1.xpose.msra.mxu0 0.0
        %1580 = vmatprep.subr.mxu0 0.0
        %1581 = vmatpush1.xpose.msra.mxu0 0.0
        %1582 = vmatprep.subr.mxu0 0.0
        %1583 = vmatpush1.xpose.msra.mxu0 0.0
        %1584 = vmatprep.subr.mxu0 0.0
        %1585 = vmatpush1.xpose.msra.mxu0 0.0
        %1586 = vmatprep.subr.mxu0 0.0
        %1587 = vmatpush1.xpose.msra.mxu0 0.0
        %1588 = vmatprep.subr.mxu0 0.0
        %1589 = vmatpush1.xpose.msra.mxu0 0.0
        %1590 = vmatprep.subr.mxu0 0.0
        %1591 = vmatpush1.xpose.msra.mxu0 0.0
        %1592 = vmatprep.subr.mxu0 0.0
        %1593 = vmatpush1.xpose.msra.mxu0 0.0
        %1594 = vmatprep.subr.mxu0 0.0
        %1595 = vmatpush1.xpose.msra.mxu0 0.0
        %1596 = vmatprep.subr.mxu0 0.0
        %1597 = vmatpush1.xpose.msra.mxu0 0.0
        %1598 = vmatprep.subr.mxu0 0.0
        %1599 = vmatpush1.xpose.msra.mxu0 0.0
        %1600 = vmatprep.subr.mxu0 0.0
        %1601 = vmatpush1.xpose.msra.mxu0 0.0
        %1602 = vmatprep.subr.mxu0 0.0
        %1603 = vmatpush1.xpose.msra.mxu0 0.0
        %1604 = vmatprep.subr.mxu0 0.0
        %1605 = vmatpush1.xpose.msra.mxu0 0.0
        %1606 = vmatprep.subr.mxu0 0.0
        %1607 = vmatpush1.xpose.msra.mxu0 0.0
        %1608 = vmatprep.subr.mxu0 0.0
        %1609 = vmatpush1.xpose.msra.mxu0 0.0
        %1610 = vmatprep.subr.mxu0 0.0
        %1611 = vmatpush1.xpose.msra.mxu0 0.0
        %1612 = vmatprep.subr.mxu0 0.0
        %1613 = vmatpush1.xpose.msra.mxu0 0.0
        %1614 = vmatprep.subr.mxu0 0.0
        %1615 = vmatpush1.xpose.msra.mxu0 0.0
        %1616 = vmatprep.subr.mxu0 0.0
        %1617 = vmatpush1.xpose.msra.mxu0 0.0
        %1618 = vmatprep.subr.mxu0 0.0
        %1619 = vmatpush1.xpose.msra.mxu0 0.0
        %1620 = vmatprep.subr.mxu0 0.0
        %1621 = vmatpush1.xpose.msra.mxu0 0.0
        %1622 = vmatprep.subr.mxu0 0.0
        %1623 = vmatpush1.xpose.msra.mxu0 0.0
        %1624 = vmatprep.subr.mxu0 0.0
        %1625 = vmatpush1.xpose.msra.mxu0 0.0
        %1626 = vmatprep.subr.mxu0 0.0
        %1627 = vmatpush1.xpose.msra.mxu0 0.0
        %1628 = vmatprep.subr.mxu0 0.0
        %1629 = vmatpush1.xpose.msra.mxu0 0.0
        %1630 = vmatprep.subr.mxu0 0.0
        %1631 = vmatpush1.xpose.msra.mxu0 0.0
        %1632 = vmatprep.subr.mxu0 0.0
        %1633 = vmatpush1.xpose.msra.mxu0 0.0
        %1634 = vmatprep.subr.mxu0 0.0
        %1635 = vmatpush1.xpose.msra.mxu0 0.0
        %1636 = vmatprep.mubr.f32.mxu0 0.0
        %1637 = vmatmul.mubr.f32.gmra.mrb[0].mxu0 %v1568
        %v1638 = vpop.f32.mrb[0].mxu0
        %v1639 = vadd.f32 0.0, %v1638
        %v1640 = vpop.f32.mrb[0].mxu0
        %1641 = vdwg.mxu0
        %v1642 = vsel %vm449, %v1639, -inf
        %1643 = vmax.xlane.f32.xlu0 %v1642
        %v1644 = vpop.xlane.xlu0 %1643
        %v1645 = vsub.f32 %v1639, %v1644
        %v1646 = vmul.f32 %v1645, 1.442695
        %v1647 = vpow.pop %v1646
        %v1648 = vsel %vm449, %v1647, 0.0
        %1649 = vadd.xlane.f32.xlu0 %v1648
        %v1650 = vpop.xlane.xlu0 %1649
        %1651 = vrot.lane.b32.xlu0 %v368, 36
        %v1652 = vpop.permute.xlu0 %1651
        %v1655 = vsel %vm449, %v1647, 0
        %1657 = vmatprep.subr.mxu0 0.0
        %1658 = vmatpush1.msra.mxu0 %v1652
        %1659 = vmatprep.subr.mxu0 0.0
        %1660 = vmatpush1.msra.mxu0 0.0
        %1661 = vmatprep.subr.mxu0 0.0
        %1662 = vmatpush1.msra.mxu0 0.0
        %1663 = vmatprep.subr.mxu0 0.0
        %1664 = vmatpush1.msra.mxu0 0.0
        %1665 = vmatprep.subr.mxu0 0.0
        %1666 = vmatpush1.msra.mxu0 0.0
        %1667 = vmatprep.subr.mxu0 0.0
        %1668 = vmatpush1.msra.mxu0 0.0
        %1669 = vmatprep.subr.mxu0 0.0
        %1670 = vmatpush1.msra.mxu0 0.0
        %1671 = vmatprep.subr.mxu0 0.0
        %1672 = vmatpush1.msra.mxu0 0.0
        %1673 = vmatprep.subr.mxu0 0.0
        %1674 = vmatpush1.msra.mxu0 0.0
        %1675 = vmatprep.subr.mxu0 0.0
        %1676 = vmatpush1.msra.mxu0 0.0
        %1677 = vmatprep.subr.mxu0 0.0
        %1678 = vmatpush1.msra.mxu0 0.0
        %1679 = vmatprep.subr.mxu0 0.0
        %1680 = vmatpush1.msra.mxu0 0.0
        %1681 = vmatprep.subr.mxu0 0.0
        %1682 = vmatpush1.msra.mxu0 0.0
        %1683 = vmatprep.subr.mxu0 0.0
        %1684 = vmatpush1.msra.mxu0 0.0
        %1685 = vmatprep.subr.mxu0 0.0
        %1686 = vmatpush1.msra.mxu0 0.0
        %1687 = vmatprep.subr.mxu0 0.0
        %1688 = vmatpush1.msra.mxu0 0.0
        %1689 = vmatprep.subr.mxu0 0.0
        %1690 = vmatpush1.msra.mxu0 0.0
        %1691 = vmatprep.subr.mxu0 0.0
        %1692 = vmatpush1.msra.mxu0 0.0
        %1693 = vmatprep.subr.mxu0 0.0
        %1694 = vmatpush1.msra.mxu0 0.0
        %1695 = vmatprep.subr.mxu0 0.0
        %1696 = vmatpush1.msra.mxu0 0.0
        %1697 = vmatprep.subr.mxu0 0.0
        %1698 = vmatpush1.msra.mxu0 0.0
        %1699 = vmatprep.subr.mxu0 0.0
        %1700 = vmatpush1.msra.mxu0 0.0
        %1701 = vmatprep.subr.mxu0 0.0
        %1702 = vmatpush1.msra.mxu0 0.0
        %1703 = vmatprep.subr.mxu0 0.0
        %1704 = vmatpush1.msra.mxu0 0.0
        %1705 = vmatprep.subr.mxu0 0.0
        %1706 = vmatpush1.msra.mxu0 0.0
        %1707 = vmatprep.subr.mxu0 0.0
        %1708 = vmatpush1.msra.mxu0 0.0
        %1709 = vmatprep.subr.mxu0 0.0
        %1710 = vmatpush1.msra.mxu0 0.0
        %1711 = vmatprep.subr.mxu0 0.0
        %1712 = vmatpush1.msra.mxu0 0.0
        %1713 = vmatprep.subr.mxu0 0.0
        %1714 = vmatpush1.msra.mxu0 0.0
        %1715 = vmatprep.subr.mxu0 0.0
        %1716 = vmatpush1.msra.mxu0 0.0
        %1717 = vmatprep.subr.mxu0 0.0
        %1718 = vmatpush1.msra.mxu0 0.0
        %1719 = vmatprep.subr.mxu0 0.0
        %1720 = vmatpush1.msra.mxu0 0.0
        %1721 = vmatprep.mubr.f32.mxu0 0.0
        %1722 = vmatmul.mubr.f32.gmra.mrb[0].mxu0 %v1655
        %v1723 = vpop.f32.mrb[0].mxu0
        %v1724 = vadd.f32 0.0, %v1723
        %v1725 = vpop.f32.mrb[0].mxu0
        %1726 = vdwg.mxu0
        %v1727 = vrcp.pop %v1650
        %v1728 = vmul.f32 %v1724, %v1727
        %1730 = vrot.lane.b32.xlu0 %v1728, 28
        %v1731 = vpop.permute.xlu0 %1730
        %vm1733 = vcmask 261344
        %1734 = vst.msk [vmem:[#allocation2] sm:$0xff] %vm1733, %v1731
        %v1735 = vld [vmem:[%s278] sm:$0xff]
        %v1736 = vld [vmem:[#allocation2] sm:$0xff]
        %v1737 = vld [vmem:[#allocation8] sm:$0xff]
        %v1738 = vld [vmem:[#allocation8 + $0x8] sm:$0xff]
        %v1739 = vld [vmem:[#allocation8 + $0x10] sm:$0xff]
        %v1740 = vld [vmem:[#allocation8 + $0x18] sm:$0xff]
        %v1742 = vsel %vm297, %v1736, 0
        %1744 = vmatprep.subr.mxu0 0.0
        %1745 = vmatpush1.msra.mxu0 %v1737
        %1746 = vmatprep.subr.mxu0 0.0
        %1747 = vmatpush1.msra.mxu0 %v1738
        %1748 = vmatprep.subr.mxu0 0.0
        %1749 = vmatpush1.msra.mxu0 %v1739
        %1750 = vmatprep.subr.mxu0 0.0
        %1751 = vmatpush1.msra.mxu0 %v1740
        %1752 = vmatprep.subr.mxu0 0.0
        %1753 = vmatpush1.msra.mxu0 0.0
        %1754 = vmatprep.subr.mxu0 0.0
        %1755 = vmatpush1.msra.mxu0 0.0
        %1756 = vmatprep.subr.mxu0 0.0
        %1757 = vmatpush1.msra.mxu0 0.0
        %1758 = vmatprep.subr.mxu0 0.0
        %1759 = vmatpush1.msra.mxu0 0.0
        %1760 = vmatprep.subr.mxu0 0.0
        %1761 = vmatpush1.msra.mxu0 0.0
        %1762 = vmatprep.subr.mxu0 0.0
        %1763 = vmatpush1.msra.mxu0 0.0
        %1764 = vmatprep.subr.mxu0 0.0
        %1765 = vmatpush1.msra.mxu0 0.0
        %1766 = vmatprep.subr.mxu0 0.0
        %1767 = vmatpush1.msra.mxu0 0.0
        %1768 = vmatprep.subr.mxu0 0.0
        %1769 = vmatpush1.msra.mxu0 0.0
        %1770 = vmatprep.subr.mxu0 0.0
        %1771 = vmatpush1.msra.mxu0 0.0
        %1772 = vmatprep.subr.mxu0 0.0
        %1773 = vmatpush1.msra.mxu0 0.0
        %1774 = vmatprep.subr.mxu0 0.0
        %1775 = vmatpush1.msra.mxu0 0.0
        %1776 = vmatprep.subr.mxu0 0.0
        %1777 = vmatpush1.msra.mxu0 0.0
        %1778 = vmatprep.subr.mxu0 0.0
        %1779 = vmatpush1.msra.mxu0 0.0
        %1780 = vmatprep.subr.mxu0 0.0
        %1781 = vmatpush1.msra.mxu0 0.0
        %1782 = vmatprep.subr.mxu0 0.0
        %1783 = vmatpush1.msra.mxu0 0.0
        %1784 = vmatprep.subr.mxu0 0.0
        %1785 = vmatpush1.msra.mxu0 0.0
        %1786 = vmatprep.subr.mxu0 0.0
        %1787 = vmatpush1.msra.mxu0 0.0
        %1788 = vmatprep.subr.mxu0 0.0
        %1789 = vmatpush1.msra.mxu0 0.0
        %1790 = vmatprep.subr.mxu0 0.0
        %1791 = vmatpush1.msra.mxu0 0.0
        %1792 = vmatprep.subr.mxu0 0.0
        %1793 = vmatpush1.msra.mxu0 0.0
        %1794 = vmatprep.subr.mxu0 0.0
        %1795 = vmatpush1.msra.mxu0 0.0
        %1796 = vmatprep.subr.mxu0 0.0
        %1797 = vmatpush1.msra.mxu0 0.0
        %1798 = vmatprep.subr.mxu0 0.0
        %1799 = vmatpush1.msra.mxu0 0.0
        %1800 = vmatprep.subr.mxu0 0.0
        %1801 = vmatpush1.msra.mxu0 0.0
        %1802 = vmatprep.subr.mxu0 0.0
        %1803 = vmatpush1.msra.mxu0 0.0
        %1804 = vmatprep.subr.mxu0 0.0
        %1805 = vmatpush1.msra.mxu0 0.0
        %1806 = vmatprep.subr.mxu0 0.0
        %1807 = vmatpush1.msra.mxu0 0.0
        %1808 = vmatprep.mubr.f32.mxu0 0.0
        %1809 = vmatmul.mubr.f32.gmra.mrb[0].mxu0 %v1742
        %v1810 = vpop.f32.mrb[0].mxu0
        %v1811 = vadd.f32 0.0, %v1810
        %v1812 = vpop.f32.mrb[0].mxu0
        %1813 = vdwg.mxu0
        %v1814 = vadd.f32 %v1735, %v1811
        %1815 = vst.msk [vmem:[%s278] sm:$0xff] %vm297, %v1814
        %s1816 = sand.u32 %s150, 1
        %s1817 = scalar_lea.sflag [#allocation5], %s1816
        %s1818 = sand.u32 %s150, 1
        %s1819 = smul.addr %s1818, 8
        %s1820 = scalar_lea.vmem [#allocation9], %s1819
        // Predicated region
        $region53: #{tpu_custom_call.1} parent=35 // pred_check
          %p1821 = pneg %p160
        $region54: #{tpu_custom_call.1} parent=35 // pred_check_branch
          %1823 = sbr.rel (%p1821) target = $region56
        $region55: #{tpu_custom_call.1} parent=35 // pred_region
          %s1825 = ssub.s32 128, 128
          %1826 = vsyncadd %s1817, %s1825
          %s1827 = sadd.s32 %s28, %s27
          %s1828 = smul.addr %s1827, 128
          %s1829 = scalar_lea.hbm %s4, %s1828
          %s1831 = sshll.u32 %s1820, 4
          %s1832 = int_to_ptr.vmem [resolvable:$true] %s1831
          %1834 = dma.vmem_to_hbm [thread:$0]  %s1832, 128, %s1829, %s1817
        $region56: #{tpu_custom_call.1} parent=35 // pred_fallthru
          _
      $region36: #{tpu_custom_call.1} parent=5 // pred_fallthru
        _
      %p1835 = scmp.le.s32.totalorder 2, %s17
      // Predicated region
      $region57: #{tpu_custom_call.1} parent=5 // pred_check
        %p1836 = pneg %p1835
      $region58: #{tpu_custom_call.1} parent=5 // pred_check_branch
        %1838 = sbr.rel (%p1836) target = $region60
      $region59: #{tpu_custom_call.1} parent=5 // pred_region
        %s1839 = ssub.s32 %s17, 2
        // Predicated region
        $region61: #{tpu_custom_call.1} parent=59 // pred_check
          %p1840 = pneg %p166
        $region62: #{tpu_custom_call.1} parent=59 // pred_check_branch
          %1842 = sbr.rel (%p1840) target = $region64
        $region63: #{tpu_custom_call.1} parent=59 // pred_region
          %s1843 = sand.u32 %s151, 1
          %s1844 = scalar_lea.sflag [#allocation5], %s1843
          %s1845 = sand.u32 %s151, 1
          %s1846 = smul.addr %s1845, 8
          %s1847 = scalar_lea.vmem [#allocation9], %s1846
          %1848 = dma.done %s1844, 128
        $region64: #{tpu_custom_call.1} parent=59 // pred_fallthru
          _
      $region60: #{tpu_custom_call.1} parent=5 // pred_fallthru
        _
    $region6: #{tpu_custom_call.1} parent=1 // loop_footer
      %s21 = sadd.s32 1, %s17
    $region7: #{tpu_custom_call.1} parent=1 // loop_footer_branch
      %16 = sbr.rel target = $region3
    $region8: #{tpu_custom_call.1} parent=1 // loop_exit
      _
    %1849 = vsyncpa [#allocation4], 1
    %s1850 = scalar_lea.sflag [#allocation4], 1
    %1851 = vsyncpa %s1850, 1
    %1852 = vsyncpa [#allocation7], 1
    %1853 = vsyncpa [#allocation5], 1
    %s1854 = scalar_lea.sflag [#allocation5], 1
    %1855 = vsyncpa %s1854, 1

</llo_original>
